<compile_context>
chip_gen: v6e
topology: v6e:2x2x1
jax: 0.10.0
libtpu: 0.0.40
codegen_flags: <defaults>
</compile_context>

<pallas_src>
import functools

import jax
import jax.numpy as jnp
from jax import lax
from jax.experimental import pallas as pl
from jax.experimental.pallas import tpu as pltpu

EPS = 1e-5
_VMEM_LIMIT = 48 * 1024 * 1024          # explicit scoped-VMEM budget (safe on v5e/v6e/v7x)
_PADL = 8                               # left halo -> sublane-aligned interior writes

_SMEM = pl.BlockSpec(memory_space=pltpu.MemorySpace.SMEM)


# ----------------------------- in-kernel helpers (traced) -----------------------------

def _lsr(x, k):
    """Logical right shift on int32 (arithmetic shift + mask of sign-extended bits)."""
    return (x >> k) & jnp.int32((1 << (32 - k)) - 1)


def _dropout2d(x, p, seed, salt):
    """Inverted dropout on a 2-D f32 slab.

    Deterministic counter-based mask: 2-multiply integer hash of (seed, salt, element index),
    kept iff hash >= p * 2^32 (unsigned compare via sign flip).  int32 VPU ops only, so it
    lowers on Mosaic and in interpret mode.  Called once per slab (iotas are not re-emitted
    per stride phase).
    """
    if p <= 0.0:
        return x
    rows, cols = x.shape
    thr = min(max(int(round(p * 4294967296.0)), 0), 4294967295) - 2147483648
    r = lax.broadcasted_iota(jnp.int32, (rows, cols), 0)
    c = lax.broadcasted_iota(jnp.int32, (rows, cols), 1)
    h = (r * jnp.int32(cols) + c) * jnp.int32(-1640531535) + seed + jnp.int32(salt)
    h = (h ^ _lsr(h, 15)) * jnp.int32(-2048144789)
    h = h ^ _lsr(h, 13)
    keep = (h ^ jnp.int32(-2147483648)) >= jnp.int32(thr)
    return jnp.where(keep, x * jnp.float32(1.0 / (1.0 - p)), jnp.float32(0.0))


# ----------------------------------- Pallas kernels -----------------------------------

def _stage1_kernel(seed_ref, xp_ref, scale_ref, shift_ref, w1_ref,
                   y1_ref, s2_ref, q2_ref, pad_ref, *, stride, p):
    """Fused BN1-normalize + ReLU + dropout + 3x3 strided conv (+ BN2 partial stats).

    One program covers NB images.  The activation is scattered per stride-phase into a
    zero-halo VMEM scratch (compute dtype); the strided 3x3 conv is a single MXU matmul of
    the im2col slab (NB*Ho*Wo, 9*Cin) against (9*Cin, Cout), accumulated in f32.
    """
    s = stride
    nb, _, _, hh, wh, cin = xp_ref.shape
    cout = w1_ref.shape[-1]
    wpad = pad_ref.shape[-2]
    m = nb * hh * wh
    zdt = pad_ref.dtype

    seed = seed_ref[0] + pl.program_id(0) * jnp.int32(7919)   # distinct mask per block

    # BN1 + ReLU + dropout on the whole NB-image block at once (single iota/hash pass)
    a = xp_ref[...].reshape(-1, cin).astype(jnp.float32)
    a = jnp.maximum(a * scale_ref[...] + shift_ref[...], 0.0)
    a = _dropout2d(a, p, seed, salt=101)
    a = a.reshape(nb, s, s, hh, wh, cin).astype(zdt)

    # re-zero only the halo rows/columns (interior is fully rewritten every step)
    pad_ref[:, :, :, 0:1, :, :] = jnp.zeros((s, s, nb, 1, wpad, cin), zdt)
    pad_ref[:, :, :, hh + 1:hh + 2, :, :] = jnp.zeros((s, s, nb, 1, wpad, cin), zdt)
    pad_ref[:, :, :, :, 0:_PADL, :] = jnp.zeros((s, s, nb, hh + 2, _PADL, cin), zdt)
    pad_ref[:, :, :, :, _PADL + wh:wpad, :] = jnp.zeros(
        (s, s, nb, hh + 2, wpad - _PADL - wh, cin), zdt)

    # interior scatter per stride phase (writes start at sublane-aligned column _PADL)
    for ph in range(s):
        for pw in range(s):
            pad_ref[ph, pw, :, 1:hh + 1, _PADL:_PADL + wh, :] = a[:, ph, pw]

    # 3x3 strided conv as ONE matmul: im2col slab (M, 9*Cin) @ (9*Cin, Cout)
    taps = []
    for kh in range(3):
        ph = (kh - 1) % s
        r0 = 1 + (kh - 1 - ph) // s
        for kw in range(3):
            pw = (kw - 1) % s
            c0 = _PADL + (kw - 1 - pw) // s
            taps.append(pad_ref[ph, pw, :, r0:r0 + hh, c0:c0 + wh, :].reshape(m, cin))
    slab = jnp.concatenate(taps, axis=-1)
    acc = jnp.dot(slab, w1_ref[...], preferred_element_type=jnp.float32)

    y1_ref[...] = acc.reshape(nb, hh * wh, cout).astype(y1_ref.dtype)
    # fused BN2 partial statistics (f32 acc; tiny bf16-rounding mismatch vs stored y1 accepted)
    s2_ref[0] = jnp.sum(acc, axis=0, keepdims=True)
    q2_ref[0] = jnp.sum(acc * acc, axis=0, keepdims=True)


def _stage2_kernel(seed_ref, y1_ref, xs_ref, scale_ref, shift_ref, w2_ref, ws_ref,
                   out_ref, pad_ref, *, stride, p, channels_major):
    """Fused BN2 + ReLU + dropout + 3x3 conv + skip path (dropout + 1x1 strided conv, or
    identity) + residual add.  Output is channels-major only when Cout < 128; otherwise the
    lane-dense (M, Cout) layout is written and the wrapper handles NCHW."""
    nb, hw, cout = y1_ref.shape
    cin = xs_ref.shape[-1]
    hp, wpad = pad_ref.shape[1], pad_ref.shape[2]
    ho, wo = hp - 2, wpad - 2 * _PADL
    m = nb * hw
    zdt = pad_ref.dtype

    pid = pl.program_id(0)
    seed_main = seed_ref[0] + pid * jnp.int32(7919)
    seed_skip = seed_ref[1] + pid * jnp.int32(7919)

    # BN2 + ReLU + dropout on y1 (single slab)
    a = y1_ref[...].reshape(m, cout).astype(jnp.float32)
    a = jnp.maximum(a * scale_ref[...] + shift_ref[...], 0.0)
    a = _dropout2d(a, p, seed_main, salt=211)
    a = a.reshape(nb, ho, wo, cout).astype(zdt)

    # halo-only zero + aligned interior write
    pad_ref[:, 0:1, :, :] = jnp.zeros((nb, 1, wpad, cout), zdt)
    pad_ref[:, ho + 1:ho + 2, :, :] = jnp.zeros((nb, 1, wpad, cout), zdt)
    pad_ref[:, :, 0:_PADL, :] = jnp.zeros((nb, hp, _PADL, cout), zdt)
    pad_ref[:, :, _PADL + wo:wpad, :] = jnp.zeros((nb, hp, wpad - _PADL - wo, cout), zdt)
    pad_ref[:, 1:ho + 1, _PADL:_PADL + wo, :] = a

    # 3x3 stride-1 conv as ONE matmul: (M, 9*Cout) @ (9*Cout, Cout)
    taps = []
    for kh in range(3):
        for kw in range(3):
            c0 = _PADL + kw - 1
            taps.append(pad_ref[:, kh:kh + ho, c0:c0 + wo, :].reshape(m, cout))
    slab = jnp.concatenate(taps, axis=-1)
    acc = jnp.dot(slab, w2_ref[...], preferred_element_type=jnp.float32)

    # skip path fused with the residual add (xs = stride-sampled raw x, phase (0,0))
    xs = xs_ref[...].reshape(m, cin).astype(jnp.float32)
    if stride != 1:
        xs = _dropout2d(xs, p, seed_skip, salt=307)
        acc = acc + jnp.dot(xs.astype(ws_ref.dtype), ws_ref[...],
                            preferred_element_type=jnp.float32)
    else:
        acc = acc + xs                      # identity skip (Cin == Cout)

    acc = acc.reshape(nb, hw, cout)
    if channels_major:                      # small Cout: make positions the lane dim
        out_ref[...] = jnp.transpose(acc, (0, 2, 1)).astype(out_ref.dtype)
    else:                                   # Cout >= 128: already lane-dense, no XLU transpose
        out_ref[...] = acc.astype(out_ref.dtype)


# --------------------------------------- wrapper ---------------------------------------

def _per_image_bytes(s, hh, wh, cin, cout, cbytes):
    hw, wp = hh * wh, wh + 2 * _PADL
    return (2 * s * s * hw * cin * 4                # xp block (f32, double-buffered)
            + 2 * hw * cout * cbytes                # y1 block (double-buffered)
            + s * s * (hh + 2) * wp * cin * cbytes  # stage-1 pad scratch
            + (hh + 2) * wp * cout * cbytes         # stage-2 pad scratch
            + hw * 9 * max(cin, cout) * cbytes      # im2col slab (live value)
            + 2 * hw * cout * 4                     # f32 accumulator + output block
            + 2 * hw * cin * 4)                     # skip-input block


def _pick_images_per_step(n, per_image_bytes, budget=12 << 20):
    nb = 1
    for cand in range(1, n + 1):
        if n % cand:
            continue
        if cand * per_image_bytes > budget:
            break
        if n >= 2 and n // cand < 2:
            continue    # keep >= 2 grid steps so both TensorCores on v7x get work
        nb = cand
    return nb


def dropout_pre_basic_block(x_nchw, params, *, stride, p, seeds,
                            compute_dtype=jnp.bfloat16, images_per_step=None):
    """Forward pass of DropoutPreBasicBlock.  Input / output are NCHW float32."""
    n, cin, h, w = x_nchw.shape
    cout = params["w1"].shape[0]
    s = stride
    assert h % s == 0 and w % s == 0, "spatial dims must be divisible by the stride"
    if s == 1:
        assert cin == cout, "identity skip requires in_channels == out_channels"
    hh, wh = h // s, w // s                      # == Ho, Wo (k=3, pad=1)
    cdt = compute_dtype
    cbytes = jnp.dtype(cdt).itemsize

    nb = (images_per_step if images_per_step is not None
          else _pick_images_per_step(n, _per_image_bytes(s, hh, wh, cin, cout, cbytes)))
    assert n % nb == 0
    grid_n = n // nb

    xf = x_nchw.astype(jnp.float32)

    # ---- BN1 batch statistics via XLA reductions (fused with the transpose below) ----
    mean1 = jnp.mean(xf, axis=(0, 2, 3))
    var1 = jnp.var(xf, axis=(0, 2, 3))           # biased batch var, as in torch BN
    scale1 = params["gamma1"] / jnp.sqrt(var1 + EPS)
    shift1 = params["beta1"] - mean1 * scale1

    # One XLA-side rearrangement: stride-phase decomposition + channels-last.
    # xp[n, ph, pw, i, j, c] = x[n, c, s*i + ph, s*j + pw]
    xp = xf.reshape(n, cin, hh, s, wh, s).transpose(0, 3, 5, 2, 4, 1)

    # weights flattened to im2col matrices (tap-major, channel-minor), MXU compute dtype
    w1 = jnp.transpose(params["w1"], (2, 3, 1, 0)).reshape(9 * cin, cout).astype(cdt)
    w2 = jnp.transpose(params["w2"], (2, 3, 1, 0)).reshape(9 * cout, cout).astype(cdt)
    ws = (jnp.transpose(params["ws"], (2, 3, 1, 0)).reshape(cin, cout).astype(cdt)
          if s != 1 else jnp.zeros((cin, cout), cdt))

    cparams = pltpu.CompilerParams(dimension_semantics=("parallel",),
                                   vmem_limit_bytes=_VMEM_LIMIT)

    # ---- stage 1: BN1 + ReLU + dropout + 3x3 strided conv (+ BN2 partial stats) ----
    y1, s2, q2 = pl.pallas_call(
        functools.partial(_stage1_kernel, stride=s, p=p),
        grid=(grid_n,),
        in_specs=[_SMEM,
                  pl.BlockSpec((nb, s, s, hh, wh, cin), lambda i: (i, 0, 0, 0, 0, 0)),
                  pl.BlockSpec((1, cin), lambda i: (0, 0)),
                  pl.BlockSpec((1, cin), lambda i: (0, 0)),
                  pl.BlockSpec((9 * cin, cout), lambda i: (0, 0))],
        out_specs=(pl.BlockSpec((nb, hh * wh, cout), lambda i: (i, 0, 0)),
                   pl.BlockSpec((1, 1, cout), lambda i: (i, 0, 0)),
                   pl.BlockSpec((1, 1, cout), lambda i: (i, 0, 0))),
        out_shape=(jax.ShapeDtypeStruct((n, hh * wh, cout), cdt),
                   jax.ShapeDtypeStruct((grid_n, 1, cout), jnp.float32),
                   jax.ShapeDtypeStruct((grid_n, 1, cout), jnp.float32)),
        scratch_shapes=[pltpu.VMEM((s, s, nb, hh + 2, wh + 2 * _PADL, cin), cdt)],
        compiler_params=cparams,
    )(jnp.array([seeds[0]], jnp.int32), xp,
      scale1.reshape(1, cin).astype(jnp.float32),
      shift1.reshape(1, cin).astype(jnp.float32), w1)

    cnt2 = float(n * hh * wh)
    mean2 = jnp.sum(s2, axis=(0, 1)) / cnt2
    var2 = jnp.maximum(jnp.sum(q2, axis=(0, 1)) / cnt2 - mean2 * mean2, 0.0)
    scale2 = params["gamma2"] / jnp.sqrt(var2 + EPS)
    shift2 = params["beta2"] - mean2 * scale2

    channels_major = cout < 128
    if channels_major:
        out_shape = jax.ShapeDtypeStruct((n, cout, hh * wh), jnp.float32)
        out_spec = pl.BlockSpec((nb, cout, hh * wh), lambda i: (i, 0, 0))
    else:
        out_shape = jax.ShapeDtypeStruct((n, hh * wh, cout), jnp.float32)
        out_spec = pl.BlockSpec((nb, hh * wh, cout), lambda i: (i, 0, 0))

    # ---- stage 2: BN2 + ReLU + dropout + 3x3 conv + fused skip + residual add ----
    out = pl.pallas_call(
        functools.partial(_stage2_kernel, stride=s, p=p, channels_major=channels_major),
        grid=(grid_n,),
        in_specs=[_SMEM,
                  pl.BlockSpec((nb, hh * wh, cout), lambda i: (i, 0, 0)),
                  pl.BlockSpec((nb, 1, 1, hh, wh, cin), lambda i: (i, 0, 0, 0, 0, 0)),
                  pl.BlockSpec((1, cout), lambda i: (0, 0)),
                  pl.BlockSpec((1, cout), lambda i: (0, 0)),
                  pl.BlockSpec((9 * cout, cout), lambda i: (0, 0)),
                  pl.BlockSpec((cin, cout), lambda i: (0, 0))],
        out_specs=out_spec,
        out_shape=out_shape,
        scratch_shapes=[pltpu.VMEM((nb, hh + 2, wh + 2 * _PADL, cout), cdt)],
        compiler_params=cparams,
    )(jnp.array([seeds[1], seeds[2]], jnp.int32), y1, xp,
      scale2.reshape(1, cout).astype(jnp.float32),
      shift2.reshape(1, cout).astype(jnp.float32), w2, ws)

    if channels_major:
        return out.reshape(n, cout, hh, wh)       # free reshape, no XLA transpose
    return out.reshape(n, hh, wh, cout).transpose(0, 3, 1, 2)


# ------------------------------ pure-JAX reference (p == 0) ------------------------------

def ref_forward(x, params, stride):
    def bn(h, g, b):
        mean = h.mean(axis=(0, 2, 3), keepdims=True)
        var = h.var(axis=(0, 2, 3), keepdims=True)          # biased, as in torch BN
        return ((h - mean) / jnp.sqrt(var + EPS) * g.reshape(1, -1, 1, 1)
                + b.reshape(1, -1, 1, 1))

    def conv(h, wgt, s, pad):
        return lax.conv_general_dilated(h, wgt, (s, s), [(pad, pad), (pad, pad)],
                                        dimension_numbers=("NCHW", "OIHW", "NCHW"))

    h = jnp.maximum(bn(x, params["gamma1"], params["beta1"]), 0.0)
    h = conv(h, params["w1"], stride, 1)
    h = jnp.maximum(bn(h, params["gamma2"], params["beta2"]), 0.0)
    h = conv(h, params["w2"], 1, 1)
    skip = conv(x, params["ws"], stride, 0) if stride != 1 else x
    return h + skip


# ------------------------------------------ main ------------------------------------------

if __name__ == "__main__":
    key = jax.random.PRNGKey(0)
    N, Cin, H, W = 2, 4, 16, 16
    Cout, stride = 8, 2
    p_drop = 0.25

    ks = jax.random.split(key, 12)
    x = jax.random.normal(ks[0], (N, Cin, H, W), jnp.float32)
    params = {
        "gamma1": 1.0 + 0.1 * jax.random.normal(ks[1], (Cin,), jnp.float32),
        "beta1": 0.05 * jax.random.normal(ks[2], (Cin,), jnp.float32),
        "w1": 0.2 * jax.random.normal(ks[3], (Cout, Cin, 3, 3), jnp.float32),
        "gamma2": 1.0 + 0.1 * jax.random.normal(ks[4], (Cout,), jnp.float32),
        "beta2": 0.05 * jax.random.normal(ks[5], (Cout,), jnp.float32),
        "w2": 0.2 * jax.random.normal(ks[6], (Cout, Cout, 3, 3), jnp.float32),
        "ws": 0.3 * jax.random.normal(ks[7], (Cout, Cin, 1, 1), jnp.float32),
    }

    # (1) strided block, dropout off, f32 compute: exact check vs XLA reference
    out_f32 = jax.block_until_ready(dropout_pre_basic_block(
        x, params, stride=stride, p=0.0, seeds=(0, 0, 0), compute_dtype=jnp.float32))
    ref = jax.block_until_ready(ref_forward(x, params, stride))
    assert out_f32.shape == (N, Cout, H // stride, W // stride), out_f32.shape
    err = float(jnp.max(jnp.abs(out_f32 - ref)))
    assert err < 2e-3, f"stride=2 f32 mismatch vs reference: {err}"

    # (2) stride-1 block (identity skip), dropout off, f32 compute: exact check
    params1 = {
        "gamma1": 1.0 + 0.1 * jax.random.normal(ks[8], (Cout,), jnp.float32),
        "beta1": 0.05 * jax.random.normal(ks[9], (Cout,), jnp.float32),
        "w1": 0.2 * jax.random.normal(ks[10], (Cout, Cout, 3, 3), jnp.float32),
        "gamma2": params["gamma2"],
        "beta2": params["beta2"],
        "w2": params["w2"],
    }
    x1 = jax.random.normal(ks[11], (N, Cout, H, W), jnp.float32)
    out_s1 = jax.block_until_ready(dropout_pre_basic_block(
        x1, params1, stride=1, p=0.0, seeds=(0, 0, 0), compute_dtype=jnp.float32))
    ref_s1 = jax.block_until_ready(ref_forward(x1, params1, 1))
    assert out_s1.shape == (N, Cout, H, W), out_s1.shape
    err1 = float(jnp.max(jnp.abs(out_s1 - ref_s1)))
    assert err1 < 2e-3, f"stride=1 f32 mismatch vs reference: {err1}"

    # (3) dropout active, bf16 MXU compute (the performance configuration)
    out_drop = jax.block_until_ready(dropout_pre_basic_block(
        x, params, stride=stride, p=p_drop, seeds=(11, 22, 33),
        compute_dtype=jnp.bfloat16))
    assert out_drop.shape == out_f32.shape
    assert bool(jnp.all(jnp.isfinite(out_drop)))
    # hash-based dropout is deterministic, so this difference check is stable
    assert float(jnp.mean(jnp.abs(out_drop - out_f32))) > 1e-2

    print("KERNEL_OK")
</pallas_src>

<mosaic_0001>
module attributes {stable_mosaic.version = 11 : i64} {
  func.func @_stage1_kernel(%arg0: i32, %arg1: memref<1xi32, #tpu.memory_space<smem>>, %arg2: memref<1x2x2x8x8x4xf32, #tpu.memory_space<vmem>>, %arg3: memref<1x4xf32, #tpu.memory_space<vmem>>, %arg4: memref<1x4xf32, #tpu.memory_space<vmem>>, %arg5: memref<36x8xf32, #tpu.memory_space<vmem>>, %arg6: memref<1x64x8xf32, #tpu.memory_space<vmem>>, %arg7: memref<1x1x8xf32, #tpu.memory_space<vmem>>, %arg8: memref<1x1x8xf32, #tpu.memory_space<vmem>>, %arg9: memref<2x2x1x10x24x4xf32, #tpu.memory_space<vmem>>) attributes {dimension_semantics = [#tpu.dimension_semantics<parallel>], iteration_bounds = array<i64: 2>, scalar_prefetch = 0 : i64, scratch_operands = 1 : i64, tpu.core_type = #tpu.core_type<tc>, window_params = [{transform_indices = @transform_0, window_bounds = array<i64: 1>}, {transform_indices = @transform_1, window_bounds = array<i64: 1, 2, 2, 8, 8, 4>}, {pipeline_mode = #tpu.pipeline_mode<synchronous>, transform_indices = @transform_2, window_bounds = array<i64: 1, 4>}, {pipeline_mode = #tpu.pipeline_mode<synchronous>, transform_indices = @transform_3, window_bounds = array<i64: 1, 4>}, {pipeline_mode = #tpu.pipeline_mode<synchronous>, transform_indices = @transform_4, window_bounds = array<i64: 36, 8>}, {transform_indices = @transform_5, window_bounds = array<i64: 1, 64, 8>}, {transform_indices = @transform_6, window_bounds = array<i64: 1, 1, 8>}, {transform_indices = @transform_7, window_bounds = array<i64: 1, 1, 8>}]} {
    %c0 = arith.constant 0 : index
    %c0_0 = arith.constant 0 : index
    %c0_1 = arith.constant 0 : index
    %c0_2 = arith.constant 0 : index
    %c0_3 = arith.constant 0 : index
    %c0_4 = arith.constant 0 : index
    %0 = vector.load %arg2[%c0, %c0_0, %c0_1, %c0_2, %c0_3, %c0_4] : memref<1x2x2x8x8x4xf32, #tpu.memory_space<vmem>>, vector<1x2x2x8x8x4xf32>
    %1 = vector.shape_cast %0 : vector<1x2x2x8x8x4xf32> to vector<256x4xf32>
    %c0_5 = arith.constant 0 : index
    %c0_6 = arith.constant 0 : index
    %2 = vector.load %arg3[%c0_5, %c0_6] : memref<1x4xf32, #tpu.memory_space<vmem>>, vector<1x4xf32>
    %3 = vector.broadcast %2 : vector<1x4xf32> to vector<256x4xf32>
    %4 = arith.mulf %1, %3 : vector<256x4xf32>
    %c0_7 = arith.constant 0 : index
    %c0_8 = arith.constant 0 : index
    %5 = vector.load %arg4[%c0_7, %c0_8] : memref<1x4xf32, #tpu.memory_space<vmem>>, vector<1x4xf32>
    %6 = vector.broadcast %5 : vector<1x4xf32> to vector<256x4xf32>
    %7 = arith.addf %4, %6 : vector<256x4xf32>
    %cst = arith.constant 0.000000e+00 : f32
    %8 = vector.broadcast %cst : f32 to vector<256x4xf32>
    %9 = arith.maximumf %7, %8 : vector<256x4xf32>
    %10 = vector.shape_cast %9 : vector<256x4xf32> to vector<1x2x2x8x8x4xf32>
    %cst_9 = arith.constant 0.000000e+00 : f32
    %11 = vector.broadcast %cst_9 : f32 to vector<2x2x1x1x24x4xf32>
    %c0_10 = arith.constant 0 : index
    %c0_11 = arith.constant 0 : index
    %c0_12 = arith.constant 0 : index
    %c0_13 = arith.constant 0 : index
    %c0_14 = arith.constant 0 : index
    %c0_15 = arith.constant 0 : index
    %12 = vector.load %arg9[%c0_10, %c0_11, %c0_12, %c0_13, %c0_14, %c0_15] : memref<2x2x1x10x24x4xf32, #tpu.memory_space<vmem>>, vector<2x2x1x1x24x4xf32>
    tpu.vector_store %arg9[%c0_10, %c0_11, %c0_12, %c0_13, %c0_14, %c0_15], %11 {strides = array<i32>} : memref<2x2x1x10x24x4xf32, #tpu.memory_space<vmem>>, vector<2x2x1x1x24x4xf32>,
    %cst_16 = arith.constant 0.000000e+00 : f32
    %13 = vector.broadcast %cst_16 : f32 to vector<2x2x1x1x24x4xf32>
    %c0_17 = arith.constant 0 : index
    %c0_18 = arith.constant 0 : index
    %c0_19 = arith.constant 0 : index
    %c9 = arith.constant 9 : index
    %c0_20 = arith.constant 0 : index
    %c0_21 = arith.constant 0 : index
    %14 = vector.load %arg9[%c0_17, %c0_18, %c0_19, %c9, %c0_20, %c0_21] : memref<2x2x1x10x24x4xf32, #tpu.memory_space<vmem>>, vector<2x2x1x1x24x4xf32>
    tpu.vector_store %arg9[%c0_17, %c0_18, %c0_19, %c9, %c0_20, %c0_21], %13 {strides = array<i32>} : memref<2x2x1x10x24x4xf32, #tpu.memory_space<vmem>>, vector<2x2x1x1x24x4xf32>,
    %cst_22 = arith.constant 0.000000e+00 : f32
    %15 = vector.broadcast %cst_22 : f32 to vector<2x2x1x10x8x4xf32>
    %c0_23 = arith.constant 0 : index
    %c0_24 = arith.constant 0 : index
    %c0_25 = arith.constant 0 : index
    %c0_26 = arith.constant 0 : index
    %c0_27 = arith.constant 0 : index
    %c0_28 = arith.constant 0 : index
    %16 = vector.load %arg9[%c0_23, %c0_24, %c0_25, %c0_26, %c0_27, %c0_28] : memref<2x2x1x10x24x4xf32, #tpu.memory_space<vmem>>, vector<2x2x1x10x8x4xf32>
    tpu.vector_store %arg9[%c0_23, %c0_24, %c0_25, %c0_26, %c0_27, %c0_28], %15 {strides = array<i32>} : memref<2x2x1x10x24x4xf32, #tpu.memory_space<vmem>>, vector<2x2x1x10x8x4xf32>,
    %cst_29 = arith.constant 0.000000e+00 : f32
    %17 = vector.broadcast %cst_29 : f32 to vector<2x2x1x10x8x4xf32>
    %c0_30 = arith.constant 0 : index
    %c0_31 = arith.constant 0 : index
    %c0_32 = arith.constant 0 : index
    %c0_33 = arith.constant 0 : index
    %c16 = arith.constant 16 : index
    %c0_34 = arith.constant 0 : index
    %18 = vector.load %arg9[%c0_30, %c0_31, %c0_32, %c0_33, %c16, %c0_34] : memref<2x2x1x10x24x4xf32, #tpu.memory_space<vmem>>, vector<2x2x1x10x8x4xf32>
    tpu.vector_store %arg9[%c0_30, %c0_31, %c0_32, %c0_33, %c16, %c0_34], %17 {strides = array<i32>} : memref<2x2x1x10x24x4xf32, #tpu.memory_space<vmem>>, vector<2x2x1x10x8x4xf32>,
    %19 = vector.extract_strided_slice %10 {offsets = [0, 0, 0, 0, 0, 0], sizes = [1, 1, 1, 8, 8, 4], strides = [1, 1, 1, 1, 1, 1]} : vector<1x2x2x8x8x4xf32> to vector<1x1x1x8x8x4xf32>
    %20 = vector.shape_cast %19 : vector<1x1x1x8x8x4xf32> to vector<1x8x8x4xf32>
    %c0_35 = arith.constant 0 : index
    %c0_36 = arith.constant 0 : index
    %c0_37 = arith.constant 0 : index
    %c1 = arith.constant 1 : index
    %c8 = arith.constant 8 : index
    %c0_38 = arith.constant 0 : index
    %21 = vector.load %arg9[%c0_35, %c0_36, %c0_37, %c1, %c8, %c0_38] : memref<2x2x1x10x24x4xf32, #tpu.memory_space<vmem>>, vector<1x1x1x8x8x4xf32>
    %22 = vector.shape_cast %21 : vector<1x1x1x8x8x4xf32> to vector<1x8x8x4xf32>
    %23 = vector.shape_cast %20 : vector<1x8x8x4xf32> to vector<1x1x1x8x8x4xf32>
    tpu.vector_store %arg9[%c0_35, %c0_36, %c0_37, %c1, %c8, %c0_38], %23 {strides = array<i32>} : memref<2x2x1x10x24x4xf32, #tpu.memory_space<vmem>>, vector<1x1x1x8x8x4xf32>,
    %24 = vector.extract_strided_slice %10 {offsets = [0, 0, 1, 0, 0, 0], sizes = [1, 1, 1, 8, 8, 4], strides = [1, 1, 1, 1, 1, 1]} : vector<1x2x2x8x8x4xf32> to vector<1x1x1x8x8x4xf32>
    %25 = vector.shape_cast %24 : vector<1x1x1x8x8x4xf32> to vector<1x8x8x4xf32>
    %c0_39 = arith.constant 0 : index
    %c1_40 = arith.constant 1 : index
    %c0_41 = arith.constant 0 : index
    %c1_42 = arith.constant 1 : index
    %c8_43 = arith.constant 8 : index
    %c0_44 = arith.constant 0 : index
    %26 = vector.load %arg9[%c0_39, %c1_40, %c0_41, %c1_42, %c8_43, %c0_44] : memref<2x2x1x10x24x4xf32, #tpu.memory_space<vmem>>, vector<1x1x1x8x8x4xf32>
    %27 = vector.shape_cast %26 : vector<1x1x1x8x8x4xf32> to vector<1x8x8x4xf32>
    %28 = vector.shape_cast %25 : vector<1x8x8x4xf32> to vector<1x1x1x8x8x4xf32>
    tpu.vector_store %arg9[%c0_39, %c1_40, %c0_41, %c1_42, %c8_43, %c0_44], %28 {strides = array<i32>} : memref<2x2x1x10x24x4xf32, #tpu.memory_space<vmem>>, vector<1x1x1x8x8x4xf32>,
    %29 = vector.extract_strided_slice %10 {offsets = [0, 1, 0, 0, 0, 0], sizes = [1, 1, 1, 8, 8, 4], strides = [1, 1, 1, 1, 1, 1]} : vector<1x2x2x8x8x4xf32> to vector<1x1x1x8x8x4xf32>
    %30 = vector.shape_cast %29 : vector<1x1x1x8x8x4xf32> to vector<1x8x8x4xf32>
    %c1_45 = arith.constant 1 : index
    %c0_46 = arith.constant 0 : index
    %c0_47 = arith.constant 0 : index
    %c1_48 = arith.constant 1 : index
    %c8_49 = arith.constant 8 : index
    %c0_50 = arith.constant 0 : index
    %31 = vector.load %arg9[%c1_45, %c0_46, %c0_47, %c1_48, %c8_49, %c0_50] : memref<2x2x1x10x24x4xf32, #tpu.memory_space<vmem>>, vector<1x1x1x8x8x4xf32>
    %32 = vector.shape_cast %31 : vector<1x1x1x8x8x4xf32> to vector<1x8x8x4xf32>
    %33 = vector.shape_cast %30 : vector<1x8x8x4xf32> to vector<1x1x1x8x8x4xf32>
    tpu.vector_store %arg9[%c1_45, %c0_46, %c0_47, %c1_48, %c8_49, %c0_50], %33 {strides = array<i32>} : memref<2x2x1x10x24x4xf32, #tpu.memory_space<vmem>>, vector<1x1x1x8x8x4xf32>,
    %34 = vector.extract_strided_slice %10 {offsets = [0, 1, 1, 0, 0, 0], sizes = [1, 1, 1, 8, 8, 4], strides = [1, 1, 1, 1, 1, 1]} : vector<1x2x2x8x8x4xf32> to vector<1x1x1x8x8x4xf32>
    %35 = vector.shape_cast %34 : vector<1x1x1x8x8x4xf32> to vector<1x8x8x4xf32>
    %c1_51 = arith.constant 1 : index
    %c1_52 = arith.constant 1 : index
    %c0_53 = arith.constant 0 : index
    %c1_54 = arith.constant 1 : index
    %c8_55 = arith.constant 8 : index
    %c0_56 = arith.constant 0 : index
    %36 = vector.load %arg9[%c1_51, %c1_52, %c0_53, %c1_54, %c8_55, %c0_56] : memref<2x2x1x10x24x4xf32, #tpu.memory_space<vmem>>, vector<1x1x1x8x8x4xf32>
    %37 = vector.shape_cast %36 : vector<1x1x1x8x8x4xf32> to vector<1x8x8x4xf32>
    %38 = vector.shape_cast %35 : vector<1x8x8x4xf32> to vector<1x1x1x8x8x4xf32>
    tpu.vector_store %arg9[%c1_51, %c1_52, %c0_53, %c1_54, %c8_55, %c0_56], %38 {strides = array<i32>} : memref<2x2x1x10x24x4xf32, #tpu.memory_space<vmem>>, vector<1x1x1x8x8x4xf32>,
    %c1_57 = arith.constant 1 : index
    %c1_58 = arith.constant 1 : index
    %c0_59 = arith.constant 0 : index
    %c0_60 = arith.constant 0 : index
    %c7 = arith.constant 7 : index
    %c0_61 = arith.constant 0 : index
    %39 = vector.load %arg9[%c1_57, %c1_58, %c0_59, %c0_60, %c7, %c0_61] : memref<2x2x1x10x24x4xf32, #tpu.memory_space<vmem>>, vector<1x1x1x8x8x4xf32>
    %40 = vector.shape_cast %39 : vector<1x1x1x8x8x4xf32> to vector<1x8x8x4xf32>
    %41 = vector.shape_cast %40 : vector<1x8x8x4xf32> to vector<64x4xf32>
    %c1_62 = arith.constant 1 : index
    %c0_63 = arith.constant 0 : index
    %c0_64 = arith.constant 0 : index
    %c0_65 = arith.constant 0 : index
    %c8_66 = arith.constant 8 : index
    %c0_67 = arith.constant 0 : index
    %42 = vector.load %arg9[%c1_62, %c0_63, %c0_64, %c0_65, %c8_66, %c0_67] : memref<2x2x1x10x24x4xf32, #tpu.memory_space<vmem>>, vector<1x1x1x8x8x4xf32>
    %43 = vector.shape_cast %42 : vector<1x1x1x8x8x4xf32> to vector<1x8x8x4xf32>
    %44 = vector.shape_cast %43 : vector<1x8x8x4xf32> to vector<64x4xf32>
    %c1_68 = arith.constant 1 : index
    %c1_69 = arith.constant 1 : index
    %c0_70 = arith.constant 0 : index
    %c0_71 = arith.constant 0 : index
    %c8_72 = arith.constant 8 : index
    %c0_73 = arith.constant 0 : index
    %45 = vector.load %arg9[%c1_68, %c1_69, %c0_70, %c0_71, %c8_72, %c0_73] : memref<2x2x1x10x24x4xf32, #tpu.memory_space<vmem>>, vector<1x1x1x8x8x4xf32>
    %46 = vector.shape_cast %45 : vector<1x1x1x8x8x4xf32> to vector<1x8x8x4xf32>
    %47 = vector.shape_cast %46 : vector<1x8x8x4xf32> to vector<64x4xf32>
    %c0_74 = arith.constant 0 : index
    %c1_75 = arith.constant 1 : index
    %c0_76 = arith.constant 0 : index
    %c1_77 = arith.constant 1 : index
    %c7_78 = arith.constant 7 : index
    %c0_79 = arith.constant 0 : index
    %48 = vector.load %arg9[%c0_74, %c1_75, %c0_76, %c1_77, %c7_78, %c0_79] : memref<2x2x1x10x24x4xf32, #tpu.memory_space<vmem>>, vector<1x1x1x8x8x4xf32>
    %49 = vector.shape_cast %48 : vector<1x1x1x8x8x4xf32> to vector<1x8x8x4xf32>
    %50 = vector.shape_cast %49 : vector<1x8x8x4xf32> to vector<64x4xf32>
    %c0_80 = arith.constant 0 : index
    %c0_81 = arith.constant 0 : index
    %c0_82 = arith.constant 0 : index
    %c1_83 = arith.constant 1 : index
    %c8_84 = arith.constant 8 : index
    %c0_85 = arith.constant 0 : index
    %51 = vector.load %arg9[%c0_80, %c0_81, %c0_82, %c1_83, %c8_84, %c0_85] : memref<2x2x1x10x24x4xf32, #tpu.memory_space<vmem>>, vector<1x1x1x8x8x4xf32>
    %52 = vector.shape_cast %51 : vector<1x1x1x8x8x4xf32> to vector<1x8x8x4xf32>
    %53 = vector.shape_cast %52 : vector<1x8x8x4xf32> to vector<64x4xf32>
    %c0_86 = arith.constant 0 : index
    %c1_87 = arith.constant 1 : index
    %c0_88 = arith.constant 0 : index
    %c1_89 = arith.constant 1 : index
    %c8_90 = arith.constant 8 : index
    %c0_91 = arith.constant 0 : index
    %54 = vector.load %arg9[%c0_86, %c1_87, %c0_88, %c1_89, %c8_90, %c0_91] : memref<2x2x1x10x24x4xf32, #tpu.memory_space<vmem>>, vector<1x1x1x8x8x4xf32>
    %55 = vector.shape_cast %54 : vector<1x1x1x8x8x4xf32> to vector<1x8x8x4xf32>
    %56 = vector.shape_cast %55 : vector<1x8x8x4xf32> to vector<64x4xf32>
    %c1_92 = arith.constant 1 : index
    %c1_93 = arith.constant 1 : index
    %c0_94 = arith.constant 0 : index
    %c1_95 = arith.constant 1 : index
    %c7_96 = arith.constant 7 : index
    %c0_97 = arith.constant 0 : index
    %57 = vector.load %arg9[%c1_92, %c1_93, %c0_94, %c1_95, %c7_96, %c0_97] : memref<2x2x1x10x24x4xf32, #tpu.memory_space<vmem>>, vector<1x1x1x8x8x4xf32>
    %58 = vector.shape_cast %57 : vector<1x1x1x8x8x4xf32> to vector<1x8x8x4xf32>
    %59 = vector.shape_cast %58 : vector<1x8x8x4xf32> to vector<64x4xf32>
    %c1_98 = arith.constant 1 : index
    %c0_99 = arith.constant 0 : index
    %c0_100 = arith.constant 0 : index
    %c1_101 = arith.constant 1 : index
    %c8_102 = arith.constant 8 : index
    %c0_103 = arith.constant 0 : index
    %60 = vector.load %arg9[%c1_98, %c0_99, %c0_100, %c1_101, %c8_102, %c0_103] : memref<2x2x1x10x24x4xf32, #tpu.memory_space<vmem>>, vector<1x1x1x8x8x4xf32>
    %61 = vector.shape_cast %60 : vector<1x1x1x8x8x4xf32> to vector<1x8x8x4xf32>
    %62 = vector.shape_cast %61 : vector<1x8x8x4xf32> to vector<64x4xf32>
    %c1_104 = arith.constant 1 : index
    %c1_105 = arith.constant 1 : index
    %c0_106 = arith.constant 0 : index
    %c1_107 = arith.constant 1 : index
    %c8_108 = arith.constant 8 : index
    %c0_109 = arith.constant 0 : index
    %63 = vector.load %arg9[%c1_104, %c1_105, %c0_106, %c1_107, %c8_108, %c0_109] : memref<2x2x1x10x24x4xf32, #tpu.memory_space<vmem>>, vector<1x1x1x8x8x4xf32>
    %64 = vector.shape_cast %63 : vector<1x1x1x8x8x4xf32> to vector<1x8x8x4xf32>
    %65 = vector.shape_cast %64 : vector<1x8x8x4xf32> to vector<64x4xf32>
    %66 = tpu.concatenate %41, %44, %47, %50, %53, %56, %59, %62, %65 in 1 : vector<64x4xf32>, vector<64x4xf32>, vector<64x4xf32>, vector<64x4xf32>, vector<64x4xf32>, vector<64x4xf32>, vector<64x4xf32>, vector<64x4xf32>, vector<64x4xf32> -> vector<64x36xf32>
    %c0_110 = arith.constant 0 : index
    %c0_111 = arith.constant 0 : index
    %67 = vector.load %arg5[%c0_110, %c0_111] : memref<36x8xf32, #tpu.memory_space<vmem>>, vector<36x8xf32>
    %cst_112 = arith.constant dense<0.000000e+00> : vector<64x8xf32>
    %68 = tpu.matmul %66, %67, %cst_112 {dimension_numbers = #tpu.dot_dimension_numbers<[1], [0], [0], [1], [0, 0, 1, 1], [], []>} : vector<64x36xf32>, vector<36x8xf32>, vector<64x8xf32> -> vector<64x8xf32>
    %69 = vector.shape_cast %68 : vector<64x8xf32> to vector<1x64x8xf32>
    %c0_113 = arith.constant 0 : index
    %c0_114 = arith.constant 0 : index
    %c0_115 = arith.constant 0 : index
    %70 = vector.load %arg6[%c0_113, %c0_114, %c0_115] : memref<1x64x8xf32, #tpu.memory_space<vmem>>, vector<1x64x8xf32>
    tpu.vector_store %arg6[%c0_113, %c0_114, %c0_115], %69 {strides = array<i32>} : memref<1x64x8xf32, #tpu.memory_space<vmem>>, vector<1x64x8xf32>,
    %cst_116 = arith.constant dense<0.000000e+00> : vector<8xf32>
    %71 = vector.multi_reduction <add>, %68, %cst_116 [0] : vector<64x8xf32> to vector<8xf32>
    %72 = vector.shape_cast %71 : vector<8xf32> to vector<1x8xf32>
    %c0_117 = arith.constant 0 : index
    %c0_118 = arith.constant 0 : index
    %c0_119 = arith.constant 0 : index
    %73 = vector.load %arg7[%c0_117, %c0_118, %c0_119] : memref<1x1x8xf32, #tpu.memory_space<vmem>>, vector<1x1x8xf32>
    %74 = vector.shape_cast %73 : vector<1x1x8xf32> to vector<1x8xf32>
    %75 = vector.shape_cast %72 : vector<1x8xf32> to vector<1x1x8xf32>
    tpu.vector_store %arg7[%c0_117, %c0_118, %c0_119], %75 {strides = array<i32>} : memref<1x1x8xf32, #tpu.memory_space<vmem>>, vector<1x1x8xf32>,
    %76 = arith.mulf %68, %68 : vector<64x8xf32>
    %cst_120 = arith.constant dense<0.000000e+00> : vector<8xf32>
    %77 = vector.multi_reduction <add>, %76, %cst_120 [0] : vector<64x8xf32> to vector<8xf32>
    %78 = vector.shape_cast %77 : vector<8xf32> to vector<1x8xf32>
    %c0_121 = arith.constant 0 : index
    %c0_122 = arith.constant 0 : index
    %c0_123 = arith.constant 0 : index
    %79 = vector.load %arg8[%c0_121, %c0_122, %c0_123] : memref<1x1x8xf32, #tpu.memory_space<vmem>>, vector<1x1x8xf32>
    %80 = vector.shape_cast %79 : vector<1x1x8xf32> to vector<1x8xf32>
    %81 = vector.shape_cast %78 : vector<1x8xf32> to vector<1x1x8xf32>
    tpu.vector_store %arg8[%c0_121, %c0_122, %c0_123], %81 {strides = array<i32>} : memref<1x1x8xf32, #tpu.memory_space<vmem>>, vector<1x1x8xf32>,
    return
  }
  func.func @transform_0(%arg0: i32) -> i32 {
    %c0_i32 = arith.constant 0 : i32
    %c0_i32_0 = arith.constant 0 : i32
    return %c0_i32 : i32
  }
  func.func @transform_1(%arg0: i32) -> (i32, i32, i32, i32, i32, i32) {
    %c0_i32 = arith.constant 0 : i32
    %c0_i32_0 = arith.constant 0 : i32
    %c0_i32_1 = arith.constant 0 : i32
    %c0_i32_2 = arith.constant 0 : i32
    %c0_i32_3 = arith.constant 0 : i32
    %c0_i32_4 = arith.constant 0 : i32
    return %arg0, %c0_i32, %c0_i32_0, %c0_i32_1, %c0_i32_2, %c0_i32_3 : i32, i32, i32, i32, i32, i32
  }
  func.func @transform_2(%arg0: i32) -> (i32, i32) {
    %c0_i32 = arith.constant 0 : i32
    %c0_i32_0 = arith.constant 0 : i32
    %c0_i32_1 = arith.constant 0 : i32
    return %c0_i32, %c0_i32_0 : i32, i32
  }
  func.func @transform_3(%arg0: i32) -> (i32, i32) {
    %c0_i32 = arith.constant 0 : i32
    %c0_i32_0 = arith.constant 0 : i32
    %c0_i32_1 = arith.constant 0 : i32
    return %c0_i32, %c0_i32_0 : i32, i32
  }
  func.func @transform_4(%arg0: i32) -> (i32, i32) {
    %c0_i32 = arith.constant 0 : i32
    %c0_i32_0 = arith.constant 0 : i32
    %c0_i32_1 = arith.constant 0 : i32
    return %c0_i32, %c0_i32_0 : i32, i32
  }
  func.func @transform_5(%arg0: i32) -> (i32, i32, i32) {
    %c0_i32 = arith.constant 0 : i32
    %c0_i32_0 = arith.constant 0 : i32
    %c0_i32_1 = arith.constant 0 : i32
    return %arg0, %c0_i32, %c0_i32_0 : i32, i32, i32
  }
  func.func @transform_6(%arg0: i32) -> (i32, i32, i32) {
    %c0_i32 = arith.constant 0 : i32
    %c0_i32_0 = arith.constant 0 : i32
    %c0_i32_1 = arith.constant 0 : i32
    return %arg0, %c0_i32, %c0_i32_0 : i32, i32, i32
  }
  func.func @transform_7(%arg0: i32) -> (i32, i32, i32) {
    %c0_i32 = arith.constant 0 : i32
    %c0_i32_0 = arith.constant 0 : i32
    %c0_i32_1 = arith.constant 0 : i32
    return %arg0, %c0_i32, %c0_i32_0 : i32, i32, i32
  }
}

</mosaic_0001>

<llo_original>
// kernel: tpu_custom_call.1
$region0: #{tpu_custom_call.1}
  #allocation0 [shape = 'u32[]', space=smem, size = 0x4, offset = 0x4, fixed_abs, tag = 'smem constant byte address 0x4 - core index']
  #allocation1 [shape = 'u32[144,128]{1,0:T(1,128)}', space=vmem, size = 0x12000, scoped, tag = 'internal scratch']
  #allocation2 [shape = 'f32[2,2,1,10,24,4]{5,4,3,2,1,0:T(8,128)}', space=vmem, size = 0x78000, scoped, tag = 'scratch operand']
  #allocation3 [shape = 's32[1]{0:T(128)S(6)}', space=smem, size = 0x200, scoped, tag = 'scoped memory for tpu_custom_call.1']
  %s0 = inlined_call_operand.<no memory space> [shape: s32[1], index: 0, kind: input, shape index: {}]
  %s1 = inlined_call_operand.vmem [shape: f32[2,2,2,8,8,4], index: 1, kind: input, shape index: {}]
  %s2 = inlined_call_operand.vmem [shape: f32[1,4], index: 2, kind: input, shape index: {}]
  %s3 = inlined_call_operand.vmem [shape: f32[1,4], index: 3, kind: input, shape index: {}]
  %s4 = inlined_call_operand.vmem [shape: f32[36,8], index: 4, kind: input, shape index: {}]
  %s5 = inlined_call_operand.vmem [shape: f32[2,64,8], index: 5, kind: output, shape index: {0}]
  %s6 = inlined_call_operand.hbm [shape: f32[2,1,8], index: 6, kind: output, shape index: {1}]
  %s7 = inlined_call_operand.hbm [shape: f32[2,1,8], index: 7, kind: output, shape index: {2}]
  %8 = xla_tuple %s5, %s6, %s7
  %s9 = sld [smem:[#allocation0]]
  $region69: #{tpu_custom_call.1} parent=0
    _
  %s11 = ssub.s32 1, %s9
  %s12 = scalar_select 0, %s11, %s9
  %13 = sst [smem:[#allocation3]] %s0
  $region1: #{tpu_custom_call.1} parent=0
    #allocation4 [shape = 'u8[1024]{0}', space=vmem, size = 0x400, scoped, tag = 'output window, operand 1']
    #allocation5 [shape = 's32[2]{0}', space=sflag, size = 0x8, scoped, tag = 'scoped memory for tpu_custom_call.1']
    #allocation6 [shape = 'u8[1024]{0}', space=vmem, size = 0x400, scoped, tag = 'output window, operand 2']
    #allocation7 [shape = 's32[2]{0}', space=sflag, size = 0x8, scoped, tag = 'scoped memory for tpu_custom_call.1']
    %14 = vsyncpa [#allocation5], 0
    %s15 = scalar_lea.sflag [#allocation5], 1
    %16 = vsyncpa %s15, 0
    %17 = vsyncpa [#allocation7], 0
    %s18 = scalar_lea.sflag [#allocation7], 1
    %19 = vsyncpa %s18, 0
    loop: start=0, step=1, limit=4
    $region2: #{tpu_custom_call.1} parent=1 // loop_pre_header
      _
    $region3: #{tpu_custom_call.1} parent=1 // loop_header
      %s21 = sphi 0, %s25
      %p22 = scmp.ge.s32.totalorder %s21, 4
      %s29 = sphi 0, %s29
      %s31 = sphi 0, %s29
      %s32 = sphi 0, %s31
      %s46 = sphi 0, %s32
      %s52 = sphi 0, %s54
      %s55 = sphi 0, %s52
      %s56 = sphi 0, %s55
      %s72 = sphi 0, %s56
      %s76 = sphi 0, %s76
      %s78 = sphi 0, %s76
      %s79 = sphi 0, %s78
      %s93 = sphi 0, %s79
      %s97 = sphi 0, %s97
      %s99 = sphi 0, %s97
      %s100 = sphi 0, %s99
      %s114 = sphi 0, %s100
      %s118 = sphi 0, %s118
      %s120 = sphi 0, %s118
      %s121 = sphi 0, %s120
      %s135 = sphi 0, %s121
      %s141 = sphi 0, %s143
      %s144 = sphi 0, %s141
      %s145 = sphi 0, %s144
      %s161 = sphi 0, %s145
      %s167 = sphi 0, %s169
      %s170 = sphi 0, %s167
      %s171 = sphi 0, %s170
      %s187 = sphi 0, %s171
      %s193 = sphi 0, %s195
      %s196 = sphi 0, %s193
      %s197 = sphi 0, %s196
      %s213 = sphi 0, %s197
    $region4: #{tpu_custom_call.1} parent=1 // loop_header_branch
      %24 = sbr.rel (%p22) target = $region8
    $region5: #{tpu_custom_call.1} parent=1 // loop_body
      %s26 = ssub.s32 %s21, 1
      %s27 = ssub.s32 %s21, 2
      %s28 = sadd.s32 %s21, 1
      %s30 = sadd.s32 %s29, 1
      %p33 = scmp.eq.s32.totalorder %s21, 1
      %p34 = scmp.ne.s32.totalorder %s29, %s31
      %p35 = scmp.eq.s32.totalorder %s21, 0
      %p36 = por %p34, %p35
      %p37 = scmp.ne.s32.totalorder %s29, %s31
      %p38 = scmp.eq.s32.totalorder %s26, 1
      %p39 = por %p37, %p38
      %p40 = scmp.ne.s32.totalorder %s31, %s32
      %p41 = scmp.eq.s32.totalorder %s26, 0
      %p42 = por %p40, %p41
      %p43 = scmp.ne.s32.totalorder %s31, %s32
      %p44 = scmp.eq.s32.totalorder %s27, 1
      %p45 = por %p43, %p44
      %p47 = scmp.ne.s32.totalorder %s32, %s46
      %p48 = scmp.eq.s32.totalorder %s27, 0
      %p49 = por %p47, %p48
      %s50 = ssub.s32 %s21, %s28
      %p51 = scmp.eq.s32.totalorder %s50, 0
      %s53 = sadd.s32 %s52, 1
      %s54 = scalar_select %p51, %s52, %s53
      %p57 = pneg %p51
      %p58 = scmp.eq.s32.totalorder %s21, 1
      %p59 = por %p57, %p58
      %p60 = scmp.ne.s32.totalorder %s52, %s55
      %p61 = scmp.eq.s32.totalorder %s21, 0
      %p62 = por %p60, %p61
      %p63 = scmp.ne.s32.totalorder %s52, %s55
      %p64 = scmp.eq.s32.totalorder %s26, 1
      %p65 = por %p63, %p64
      %p66 = scmp.ne.s32.totalorder %s55, %s56
      %p67 = scmp.eq.s32.totalorder %s26, 0
      %p68 = por %p66, %p67
      %p69 = scmp.ne.s32.totalorder %s55, %s56
      %p70 = scmp.eq.s32.totalorder %s27, 1
      %p71 = por %p69, %p70
      %p73 = scmp.ne.s32.totalorder %s56, %s72
      %p74 = scmp.eq.s32.totalorder %s27, 0
      %p75 = por %p73, %p74
      %s77 = sadd.s32 %s76, 1
      %p80 = scmp.eq.s32.totalorder %s21, 1
      %p81 = scmp.ne.s32.totalorder %s76, %s78
      %p82 = scmp.eq.s32.totalorder %s21, 0
      %p83 = por %p81, %p82
      %p84 = scmp.ne.s32.totalorder %s76, %s78
      %p85 = scmp.eq.s32.totalorder %s26, 1
      %p86 = por %p84, %p85
      %p87 = scmp.ne.s32.totalorder %s78, %s79
      %p88 = scmp.eq.s32.totalorder %s26, 0
      %p89 = por %p87, %p88
      %p90 = scmp.ne.s32.totalorder %s78, %s79
      %p91 = scmp.eq.s32.totalorder %s27, 1
      %p92 = por %p90, %p91
      %p94 = scmp.ne.s32.totalorder %s79, %s93
      %p95 = scmp.eq.s32.totalorder %s27, 0
      %p96 = por %p94, %p95
      %s98 = sadd.s32 %s97, 1
      %p101 = scmp.eq.s32.totalorder %s21, 1
      %p102 = scmp.ne.s32.totalorder %s97, %s99
      %p103 = scmp.eq.s32.totalorder %s21, 0
      %p104 = por %p102, %p103
      %p105 = scmp.ne.s32.totalorder %s97, %s99
      %p106 = scmp.eq.s32.totalorder %s26, 1
      %p107 = por %p105, %p106
      %p108 = scmp.ne.s32.totalorder %s99, %s100
      %p109 = scmp.eq.s32.totalorder %s26, 0
      %p110 = por %p108, %p109
      %p111 = scmp.ne.s32.totalorder %s99, %s100
      %p112 = scmp.eq.s32.totalorder %s27, 1
      %p113 = por %p111, %p112
      %p115 = scmp.ne.s32.totalorder %s100, %s114
      %p116 = scmp.eq.s32.totalorder %s27, 0
      %p117 = por %p115, %p116
      %s119 = sadd.s32 %s118, 1
      %p122 = scmp.eq.s32.totalorder %s21, 1
      %p123 = scmp.ne.s32.totalorder %s118, %s120
      %p124 = scmp.eq.s32.totalorder %s21, 0
      %p125 = por %p123, %p124
      %p126 = scmp.ne.s32.totalorder %s118, %s120
      %p127 = scmp.eq.s32.totalorder %s26, 1
      %p128 = por %p126, %p127
      %p129 = scmp.ne.s32.totalorder %s120, %s121
      %p130 = scmp.eq.s32.totalorder %s26, 0
      %p131 = por %p129, %p130
      %p132 = scmp.ne.s32.totalorder %s120, %s121
      %p133 = scmp.eq.s32.totalorder %s27, 1
      %p134 = por %p132, %p133
      %p136 = scmp.ne.s32.totalorder %s121, %s135
      %p137 = scmp.eq.s32.totalorder %s27, 0
      %p138 = por %p136, %p137
      %s139 = ssub.s32 %s21, %s28
      %p140 = scmp.eq.s32.totalorder %s139, 0
      %s142 = sadd.s32 %s141, 1
      %s143 = scalar_select %p140, %s141, %s142
      %p146 = pneg %p140
      %p147 = scmp.eq.s32.totalorder %s21, 1
      %p148 = por %p146, %p147
      %p149 = scmp.ne.s32.totalorder %s141, %s144
      %p150 = scmp.eq.s32.totalorder %s21, 0
      %p151 = por %p149, %p150
      %p152 = scmp.ne.s32.totalorder %s141, %s144
      %p153 = scmp.eq.s32.totalorder %s26, 1
      %p154 = por %p152, %p153
      %p155 = scmp.ne.s32.totalorder %s144, %s145
      %p156 = scmp.eq.s32.totalorder %s26, 0
      %p157 = por %p155, %p156
      %p158 = scmp.ne.s32.totalorder %s144, %s145
      %p159 = scmp.eq.s32.totalorder %s27, 1
      %p160 = por %p158, %p159
      %p162 = scmp.ne.s32.totalorder %s145, %s161
      %p163 = scmp.eq.s32.totalorder %s27, 0
      %p164 = por %p162, %p163
      %s165 = ssub.s32 %s21, %s28
      %p166 = scmp.eq.s32.totalorder %s165, 0
      %s168 = sadd.s32 %s167, 1
      %s169 = scalar_select %p166, %s167, %s168
      %p172 = pneg %p166
      %p173 = scmp.eq.s32.totalorder %s21, 1
      %p174 = por %p172, %p173
      %p175 = scmp.ne.s32.totalorder %s167, %s170
      %p176 = scmp.eq.s32.totalorder %s21, 0
      %p177 = por %p175, %p176
      %p178 = scmp.ne.s32.totalorder %s167, %s170
      %p179 = scmp.eq.s32.totalorder %s26, 1
      %p180 = por %p178, %p179
      %p181 = scmp.ne.s32.totalorder %s170, %s171
      %p182 = scmp.eq.s32.totalorder %s26, 0
      %p183 = por %p181, %p182
      %p184 = scmp.ne.s32.totalorder %s170, %s171
      %p185 = scmp.eq.s32.totalorder %s27, 1
      %p186 = por %p184, %p185
      %p188 = scmp.ne.s32.totalorder %s171, %s187
      %p189 = scmp.eq.s32.totalorder %s27, 0
      %p190 = por %p188, %p189
      %s191 = ssub.s32 %s21, %s28
      %p192 = scmp.eq.s32.totalorder %s191, 0
      %s194 = sadd.s32 %s193, 1
      %s195 = scalar_select %p192, %s193, %s194
      %p198 = pneg %p192
      %p199 = scmp.eq.s32.totalorder %s21, 1
      %p200 = por %p198, %p199
      %p201 = scmp.ne.s32.totalorder %s193, %s196
      %p202 = scmp.eq.s32.totalorder %s21, 0
      %p203 = por %p201, %p202
      %p204 = scmp.ne.s32.totalorder %s193, %s196
      %p205 = scmp.eq.s32.totalorder %s26, 1
      %p206 = por %p204, %p205
      %p207 = scmp.ne.s32.totalorder %s196, %s197
      %p208 = scmp.eq.s32.totalorder %s26, 0
      %p209 = por %p207, %p208
      %p210 = scmp.ne.s32.totalorder %s196, %s197
      %p211 = scmp.eq.s32.totalorder %s27, 1
      %p212 = por %p210, %p211
      %p214 = scmp.ne.s32.totalorder %s197, %s213
      %p215 = scmp.eq.s32.totalorder %s27, 0
      %p216 = por %p214, %p215
      %p217 = scmp.le.s32.totalorder 1, %s21
      %p218 = scmp.lt.s32.totalorder %s21, 3
      %p219 = pnand %p217, %p218
      %p220 = pneg %p219
      // Predicated region
      $region9: #{tpu_custom_call.1} parent=5 // pred_check
        _
      $region10: #{tpu_custom_call.1} parent=5 // pred_check_branch
        %222 = sbr.rel (%p219) target = $region12
      $region11: #{tpu_custom_call.1} parent=5 // pred_region
        %s223 = ssub.s32 %s21, 1
        // Predicated region
        $region13: #{tpu_custom_call.1} parent=11 // pred_check
          %p224 = pneg %p42
        $region14: #{tpu_custom_call.1} parent=11 // pred_check_branch
          %226 = sbr.rel (%p224) target = $region16
        $region15: #{tpu_custom_call.1} parent=11 // pred_region
          _
        $region16: #{tpu_custom_call.1} parent=11 // pred_fallthru
          _
        // Predicated region
        $region17: #{tpu_custom_call.1} parent=11 // pred_check
          %p227 = pneg %p89
        $region18: #{tpu_custom_call.1} parent=11 // pred_check_branch
          %229 = sbr.rel (%p227) target = $region20
        $region19: #{tpu_custom_call.1} parent=11 // pred_region
          _
        $region20: #{tpu_custom_call.1} parent=11 // pred_fallthru
          _
        // Predicated region
        $region21: #{tpu_custom_call.1} parent=11 // pred_check
          %p230 = pneg %p110
        $region22: #{tpu_custom_call.1} parent=11 // pred_check_branch
          %232 = sbr.rel (%p230) target = $region24
        $region23: #{tpu_custom_call.1} parent=11 // pred_region
          _
        $region24: #{tpu_custom_call.1} parent=11 // pred_fallthru
          _
        // Predicated region
        $region25: #{tpu_custom_call.1} parent=11 // pred_check
          %p233 = pneg %p131
        $region26: #{tpu_custom_call.1} parent=11 // pred_check_branch
          %235 = sbr.rel (%p233) target = $region28
        $region27: #{tpu_custom_call.1} parent=11 // pred_region
          _
        $region28: #{tpu_custom_call.1} parent=11 // pred_fallthru
          _
      $region12: #{tpu_custom_call.1} parent=5 // pred_fallthru
        _
      %p236 = scmp.lt.s32.totalorder %s21, 2
      // Predicated region
      $region29: #{tpu_custom_call.1} parent=5 // pred_check
        %p237 = pneg %p236
      $region30: #{tpu_custom_call.1} parent=5 // pred_check_branch
        %239 = sbr.rel (%p237) target = $region32
      $region31: #{tpu_custom_call.1} parent=5 // pred_region
        // Predicated region
        $region33: #{tpu_custom_call.1} parent=31 // pred_check
          %p240 = pneg %p62
        $region34: #{tpu_custom_call.1} parent=31 // pred_check_branch
          %242 = sbr.rel (%p240) target = $region36
        $region35: #{tpu_custom_call.1} parent=31 // pred_region
          %p243 = scmp.lt.s32.totalorder %s21, 1
          %s244 = scalar_select %p243, %s21, 1
          %s245 = smul.addr %s244, 32
          %s246 = smul.addr %s245, 8
          %s247 = scalar_lea.vmem %s1, %s246
        $region36: #{tpu_custom_call.1} parent=31 // pred_fallthru
          _
      $region32: #{tpu_custom_call.1} parent=5 // pred_fallthru
        _
      %p248 = scmp.le.s32.totalorder 1, %s21
      %p249 = scmp.lt.s32.totalorder %s21, 3
      %p250 = pnand %p248, %p249
      %p251 = pneg %p250
      // Predicated region
      $region37: #{tpu_custom_call.1} parent=5 // pred_check
        _
      $region38: #{tpu_custom_call.1} parent=5 // pred_check_branch
        %253 = sbr.rel (%p250) target = $region40
      $region39: #{tpu_custom_call.1} parent=5 // pred_region
        %s254 = ssub.s32 %s21, 1
        %p255 = pneg %p42
        %p256 = pneg %p39
        %p257 = scmp.lt.s32.totalorder %s26, 1
        %s258 = scalar_select %p257, %s26, 1
        %s259 = smul.addr %s258, 32
        %s260 = smul.addr %s259, 8
        %s261 = scalar_lea.vmem %s1, %s260
        %p262 = pneg %p68
        %p263 = pneg %p65
        %p264 = pneg %p89
        %p265 = pneg %p86
        %p266 = pneg %p110
        %p267 = pneg %p107
        %p268 = pneg %p131
        %p269 = pneg %p128
        %p270 = pneg %p157
        %p271 = pneg %p154
        %p272 = scmp.lt.s32.totalorder %s26, 1
        %s273 = scalar_select %p272, %s26, 1
        %s274 = smul.addr %s273, 8
        %s275 = smul.addr %s274, 8
        %s276 = scalar_lea.vmem %s5, %s275
        %p277 = pneg %p183
        %p278 = pneg %p180
        %s279 = sand.u32 %s170, 1
        %s280 = scalar_lea.sflag [#allocation5], %s279
        %s281 = sand.u32 %s170, 1
        %s282 = scalar_lea.vmem [#allocation4], %s281
        %p283 = pneg %p209
        %p284 = pneg %p206
        %s285 = sand.u32 %s196, 1
        %s286 = scalar_lea.sflag [#allocation7], %s285
        %s287 = sand.u32 %s196, 1
        %s288 = scalar_lea.vmem [#allocation6], %s287
        %p289 = scmp.lt.s32.totalorder %s26, 1
        %s290 = scalar_select %p289, %s26, 1
        %s291 = smul.addr %s290, 32
        %s292 = smul.addr %s291, 8
        %s293 = scalar_lea.vmem %s1, %s292
        %p294 = scmp.lt.s32.totalorder %s26, 1
        %s295 = scalar_select %p294, %s26, 1
        %s296 = smul.addr %s295, 8
        %s297 = smul.addr %s296, 8
        %s298 = scalar_lea.vmem %s5, %s297
        %v299 = vld [vmem:[%s293] sm:$0xff]
        %v300 = vld [vmem:[%s293 + $0x8] sm:$0xff]
        %v301 = vld [vmem:[%s293 + $0x10] sm:$0xff]
        %v302 = vld [vmem:[%s293 + $0x18] sm:$0xff]
        %v303 = vld [vmem:[%s293 + $0x20] sm:$0xff]
        %v304 = vld [vmem:[%s293 + $0x28] sm:$0xff]
        %v305 = vld [vmem:[%s293 + $0x30] sm:$0xff]
        %v306 = vld [vmem:[%s293 + $0x38] sm:$0xff]
        %v307 = vld [vmem:[%s293 + $0x40] sm:$0xff]
        %v308 = vld [vmem:[%s293 + $0x48] sm:$0xff]
        %v309 = vld [vmem:[%s293 + $0x50] sm:$0xff]
        %v310 = vld [vmem:[%s293 + $0x58] sm:$0xff]
        %v311 = vld [vmem:[%s293 + $0x60] sm:$0xff]
        %v312 = vld [vmem:[%s293 + $0x68] sm:$0xff]
        %v313 = vld [vmem:[%s293 + $0x70] sm:$0xff]
        %v314 = vld [vmem:[%s293 + $0x78] sm:$0xff]
        %v315 = vld [vmem:[%s293 + $0x80] sm:$0xff]
        %v316 = vld [vmem:[%s293 + $0x88] sm:$0xff]
        %v317 = vld [vmem:[%s293 + $0x90] sm:$0xff]
        %v318 = vld [vmem:[%s293 + $0x98] sm:$0xff]
        %v319 = vld [vmem:[%s293 + $0xa0] sm:$0xff]
        %v320 = vld [vmem:[%s293 + $0xa8] sm:$0xff]
        %v321 = vld [vmem:[%s293 + $0xb0] sm:$0xff]
        %v322 = vld [vmem:[%s293 + $0xb8] sm:$0xff]
        %v323 = vld [vmem:[%s293 + $0xc0] sm:$0xff]
        %v324 = vld [vmem:[%s293 + $0xc8] sm:$0xff]
        %v325 = vld [vmem:[%s293 + $0xd0] sm:$0xff]
        %v326 = vld [vmem:[%s293 + $0xd8] sm:$0xff]
        %v327 = vld [vmem:[%s293 + $0xe0] sm:$0xff]
        %v328 = vld [vmem:[%s293 + $0xe8] sm:$0xff]
        %v329 = vld [vmem:[%s293 + $0xf0] sm:$0xff]
        %v330 = vld [vmem:[%s293 + $0xf8] sm:$0xff]
        %v331 = vld [vmem:[%s2] sm:$0x1]
        %v333 = vlaneseq
        %v334 = vshrl.u32 %v333, 7
        %v335 = vsub.s32 0, %v334
        %v336 = vrot.slane %v331, %v335
        %v338 = vmul.f32 %v299, %v336
        %v339 = vmul.f32 %v300, %v336
        %v340 = vmul.f32 %v301, %v336
        %v341 = vmul.f32 %v302, %v336
        %v342 = vmul.f32 %v303, %v336
        %v343 = vmul.f32 %v304, %v336
        %v344 = vmul.f32 %v305, %v336
        %v345 = vmul.f32 %v306, %v336
        %v346 = vmul.f32 %v307, %v336
        %v347 = vmul.f32 %v308, %v336
        %v348 = vmul.f32 %v309, %v336
        %v349 = vmul.f32 %v310, %v336
        %v350 = vmul.f32 %v311, %v336
        %v351 = vmul.f32 %v312, %v336
        %v352 = vmul.f32 %v313, %v336
        %v353 = vmul.f32 %v314, %v336
        %v354 = vmul.f32 %v315, %v336
        %v355 = vmul.f32 %v316, %v336
        %v356 = vmul.f32 %v317, %v336
        %v357 = vmul.f32 %v318, %v336
        %v358 = vmul.f32 %v319, %v336
        %v359 = vmul.f32 %v320, %v336
        %v360 = vmul.f32 %v321, %v336
        %v361 = vmul.f32 %v322, %v336
        %v362 = vmul.f32 %v323, %v336
        %v363 = vmul.f32 %v324, %v336
        %v364 = vmul.f32 %v325, %v336
        %v365 = vmul.f32 %v326, %v336
        %v366 = vmul.f32 %v327, %v336
        %v367 = vmul.f32 %v328, %v336
        %v368 = vmul.f32 %v329, %v336
        %v369 = vmul.f32 %v330, %v336
        %v370 = vld [vmem:[%s3] sm:$0x1]
        %v372 = vlaneseq
        %v373 = vshrl.u32 %v372, 7
        %v374 = vsub.s32 0, %v373
        %v375 = vrot.slane %v370, %v374
        %v377 = vadd.f32 %v338, %v375
        %v378 = vadd.f32 %v339, %v375
        %v379 = vadd.f32 %v340, %v375
        %v380 = vadd.f32 %v341, %v375
        %v381 = vadd.f32 %v342, %v375
        %v382 = vadd.f32 %v343, %v375
        %v383 = vadd.f32 %v344, %v375
        %v384 = vadd.f32 %v345, %v375
        %v385 = vadd.f32 %v346, %v375
        %v386 = vadd.f32 %v347, %v375
        %v387 = vadd.f32 %v348, %v375
        %v388 = vadd.f32 %v349, %v375
        %v389 = vadd.f32 %v350, %v375
        %v390 = vadd.f32 %v351, %v375
        %v391 = vadd.f32 %v352, %v375
        %v392 = vadd.f32 %v353, %v375
        %v393 = vadd.f32 %v354, %v375
        %v394 = vadd.f32 %v355, %v375
        %v395 = vadd.f32 %v356, %v375
        %v396 = vadd.f32 %v357, %v375
        %v397 = vadd.f32 %v358, %v375
        %v398 = vadd.f32 %v359, %v375
        %v399 = vadd.f32 %v360, %v375
        %v400 = vadd.f32 %v361, %v375
        %v401 = vadd.f32 %v362, %v375
        %v402 = vadd.f32 %v363, %v375
        %v403 = vadd.f32 %v364, %v375
        %v404 = vadd.f32 %v365, %v375
        %v405 = vadd.f32 %v366, %v375
        %v406 = vadd.f32 %v367, %v375
        %v407 = vadd.f32 %v368, %v375
        %v408 = vadd.f32 %v369, %v375
        %v409 = vmax.f32 %v377, 0.0
        %v410 = vmax.f32 %v378, 0.0
        %v411 = vmax.f32 %v379, 0.0
        %v412 = vmax.f32 %v380, 0.0
        %v413 = vmax.f32 %v381, 0.0
        %v414 = vmax.f32 %v382, 0.0
        %v415 = vmax.f32 %v383, 0.0
        %v416 = vmax.f32 %v384, 0.0
        %v417 = vmax.f32 %v385, 0.0
        %v418 = vmax.f32 %v386, 0.0
        %v419 = vmax.f32 %v387, 0.0
        %v420 = vmax.f32 %v388, 0.0
        %v421 = vmax.f32 %v389, 0.0
        %v422 = vmax.f32 %v390, 0.0
        %v423 = vmax.f32 %v391, 0.0
        %v424 = vmax.f32 %v392, 0.0
        %v425 = vmax.f32 %v393, 0.0
        %v426 = vmax.f32 %v394, 0.0
        %v427 = vmax.f32 %v395, 0.0
        %v428 = vmax.f32 %v396, 0.0
        %v429 = vmax.f32 %v397, 0.0
        %v430 = vmax.f32 %v398, 0.0
        %v431 = vmax.f32 %v399, 0.0
        %v432 = vmax.f32 %v400, 0.0
        %v433 = vmax.f32 %v401, 0.0
        %v434 = vmax.f32 %v402, 0.0
        %v435 = vmax.f32 %v403, 0.0
        %v436 = vmax.f32 %v404, 0.0
        %v437 = vmax.f32 %v405, 0.0
        %v438 = vmax.f32 %v406, 0.0
        %v439 = vmax.f32 %v407, 0.0
        %v440 = vmax.f32 %v408, 0.0
        %vm441 = vcmask 31744
        %442 = vst.msk [vmem:[#allocation2] sm:$0xff] %vm441, 0.0
        %443 = vst.msk [vmem:[#allocation2 + $0x8] sm:$0xff] %vm441, 0.0
        %444 = vst.msk [vmem:[#allocation2 + $0x10] sm:$0xff] %vm441, 0.0
        %445 = vst.msk [vmem:[#allocation2 + $0xf0] sm:$0xff] %vm441, 0.0
        %446 = vst.msk [vmem:[#allocation2 + $0xf8] sm:$0xff] %vm441, 0.0
        %447 = vst.msk [vmem:[#allocation2 + $0x100] sm:$0xff] %vm441, 0.0
        %448 = vst.msk [vmem:[#allocation2 + $0x1e0] sm:$0xff] %vm441, 0.0
        %449 = vst.msk [vmem:[#allocation2 + $0x1e8] sm:$0xff] %vm441, 0.0
        %450 = vst.msk [vmem:[#allocation2 + $0x1f0] sm:$0xff] %vm441, 0.0
        %451 = vst.msk [vmem:[#allocation2 + $0x2d0] sm:$0xff] %vm441, 0.0
        %452 = vst.msk [vmem:[#allocation2 + $0x2d8] sm:$0xff] %vm441, 0.0
        %453 = vst.msk [vmem:[#allocation2 + $0x2e0] sm:$0xff] %vm441, 0.0
        %s454 = scalar_lea.vmem [#allocation2], 216
        %455 = vst.msk [vmem:[%s454] sm:$0xff] %vm441, 0.0
        %456 = vst.msk [vmem:[%s454 + $0x8] sm:$0xff] %vm441, 0.0
        %457 = vst.msk [vmem:[%s454 + $0x10] sm:$0xff] %vm441, 0.0
        %458 = vst.msk [vmem:[%s454 + $0xf0] sm:$0xff] %vm441, 0.0
        %459 = vst.msk [vmem:[%s454 + $0xf8] sm:$0xff] %vm441, 0.0
        %460 = vst.msk [vmem:[%s454 + $0x100] sm:$0xff] %vm441, 0.0
        %461 = vst.msk [vmem:[%s454 + $0x1e0] sm:$0xff] %vm441, 0.0
        %462 = vst.msk [vmem:[%s454 + $0x1e8] sm:$0xff] %vm441, 0.0
        %463 = vst.msk [vmem:[%s454 + $0x1f0] sm:$0xff] %vm441, 0.0
        %464 = vst.msk [vmem:[%s454 + $0x2d0] sm:$0xff] %vm441, 0.0
        %465 = vst.msk [vmem:[%s454 + $0x2d8] sm:$0xff] %vm441, 0.0
        %466 = vst.msk [vmem:[%s454 + $0x2e0] sm:$0xff] %vm441, 0.0
        %467 = vst.msk [vmem:[#allocation2] sm:$0xff] %vm441, 0.0
        %468 = vst.msk [vmem:[#allocation2 + $0x18] sm:$0xff] %vm441, 0.0
        %469 = vst.msk [vmem:[#allocation2 + $0x30] sm:$0xff] %vm441, 0.0
        %470 = vst.msk [vmem:[#allocation2 + $0x48] sm:$0xff] %vm441, 0.0
        %471 = vst.msk [vmem:[#allocation2 + $0x60] sm:$0xff] %vm441, 0.0
        %472 = vst.msk [vmem:[#allocation2 + $0x78] sm:$0xff] %vm441, 0.0
        %473 = vst.msk [vmem:[#allocation2 + $0x90] sm:$0xff] %vm441, 0.0
        %474 = vst.msk [vmem:[#allocation2 + $0xa8] sm:$0xff] %vm441, 0.0
        %475 = vst.msk [vmem:[#allocation2 + $0xc0] sm:$0xff] %vm441, 0.0
        %476 = vst.msk [vmem:[#allocation2 + $0xd8] sm:$0xff] %vm441, 0.0
        %477 = vst.msk [vmem:[#allocation2 + $0xf0] sm:$0xff] %vm441, 0.0
        %478 = vst.msk [vmem:[#allocation2 + $0x108] sm:$0xff] %vm441, 0.0
        %479 = vst.msk [vmem:[#allocation2 + $0x120] sm:$0xff] %vm441, 0.0
        %480 = vst.msk [vmem:[#allocation2 + $0x138] sm:$0xff] %vm441, 0.0
        %481 = vst.msk [vmem:[#allocation2 + $0x150] sm:$0xff] %vm441, 0.0
        %482 = vst.msk [vmem:[#allocation2 + $0x168] sm:$0xff] %vm441, 0.0
        %483 = vst.msk [vmem:[#allocation2 + $0x180] sm:$0xff] %vm441, 0.0
        %484 = vst.msk [vmem:[#allocation2 + $0x198] sm:$0xff] %vm441, 0.0
        %485 = vst.msk [vmem:[#allocation2 + $0x1b0] sm:$0xff] %vm441, 0.0
        %486 = vst.msk [vmem:[#allocation2 + $0x1c8] sm:$0xff] %vm441, 0.0
        %487 = vst.msk [vmem:[#allocation2 + $0x1e0] sm:$0xff] %vm441, 0.0
        %488 = vst.msk [vmem:[#allocation2 + $0x1f8] sm:$0xff] %vm441, 0.0
        %489 = vst.msk [vmem:[#allocation2 + $0x210] sm:$0xff] %vm441, 0.0
        %490 = vst.msk [vmem:[#allocation2 + $0x228] sm:$0xff] %vm441, 0.0
        %491 = vst.msk [vmem:[#allocation2 + $0x240] sm:$0xff] %vm441, 0.0
        %492 = vst.msk [vmem:[#allocation2 + $0x258] sm:$0xff] %vm441, 0.0
        %493 = vst.msk [vmem:[#allocation2 + $0x270] sm:$0xff] %vm441, 0.0
        %494 = vst.msk [vmem:[#allocation2 + $0x288] sm:$0xff] %vm441, 0.0
        %495 = vst.msk [vmem:[#allocation2 + $0x2a0] sm:$0xff] %vm441, 0.0
        %496 = vst.msk [vmem:[#allocation2 + $0x2b8] sm:$0xff] %vm441, 0.0
        %497 = vst.msk [vmem:[#allocation2 + $0x2d0] sm:$0xff] %vm441, 0.0
        %498 = vst.msk [vmem:[#allocation2 + $0x2e8] sm:$0xff] %vm441, 0.0
        %499 = vst.msk [vmem:[#allocation2 + $0x300] sm:$0xff] %vm441, 0.0
        %500 = vst.msk [vmem:[#allocation2 + $0x318] sm:$0xff] %vm441, 0.0
        %501 = vst.msk [vmem:[#allocation2 + $0x330] sm:$0xff] %vm441, 0.0
        %502 = vst.msk [vmem:[#allocation2 + $0x348] sm:$0xff] %vm441, 0.0
        %503 = vst.msk [vmem:[#allocation2 + $0x360] sm:$0xff] %vm441, 0.0
        %504 = vst.msk [vmem:[#allocation2 + $0x378] sm:$0xff] %vm441, 0.0
        %505 = vst.msk [vmem:[#allocation2 + $0x390] sm:$0xff] %vm441, 0.0
        %506 = vst.msk [vmem:[#allocation2 + $0x3a8] sm:$0xff] %vm441, 0.0
        %507 = vst.msk [vmem:[#allocation2 + $0x10] sm:$0xff] %vm441, 0.0
        %508 = vst.msk [vmem:[#allocation2 + $0x28] sm:$0xff] %vm441, 0.0
        %509 = vst.msk [vmem:[#allocation2 + $0x40] sm:$0xff] %vm441, 0.0
        %510 = vst.msk [vmem:[#allocation2 + $0x58] sm:$0xff] %vm441, 0.0
        %511 = vst.msk [vmem:[#allocation2 + $0x70] sm:$0xff] %vm441, 0.0
        %512 = vst.msk [vmem:[#allocation2 + $0x88] sm:$0xff] %vm441, 0.0
        %513 = vst.msk [vmem:[#allocation2 + $0xa0] sm:$0xff] %vm441, 0.0
        %514 = vst.msk [vmem:[#allocation2 + $0xb8] sm:$0xff] %vm441, 0.0
        %515 = vst.msk [vmem:[#allocation2 + $0xd0] sm:$0xff] %vm441, 0.0
        %516 = vst.msk [vmem:[#allocation2 + $0xe8] sm:$0xff] %vm441, 0.0
        %517 = vst.msk [vmem:[#allocation2 + $0x100] sm:$0xff] %vm441, 0.0
        %518 = vst.msk [vmem:[#allocation2 + $0x118] sm:$0xff] %vm441, 0.0
        %519 = vst.msk [vmem:[#allocation2 + $0x130] sm:$0xff] %vm441, 0.0
        %520 = vst.msk [vmem:[#allocation2 + $0x148] sm:$0xff] %vm441, 0.0
        %521 = vst.msk [vmem:[#allocation2 + $0x160] sm:$0xff] %vm441, 0.0
        %522 = vst.msk [vmem:[#allocation2 + $0x178] sm:$0xff] %vm441, 0.0
        %523 = vst.msk [vmem:[#allocation2 + $0x190] sm:$0xff] %vm441, 0.0
        %524 = vst.msk [vmem:[#allocation2 + $0x1a8] sm:$0xff] %vm441, 0.0
        %525 = vst.msk [vmem:[#allocation2 + $0x1c0] sm:$0xff] %vm441, 0.0
        %526 = vst.msk [vmem:[#allocation2 + $0x1d8] sm:$0xff] %vm441, 0.0
        %527 = vst.msk [vmem:[#allocation2 + $0x1f0] sm:$0xff] %vm441, 0.0
        %528 = vst.msk [vmem:[#allocation2 + $0x208] sm:$0xff] %vm441, 0.0
        %529 = vst.msk [vmem:[#allocation2 + $0x220] sm:$0xff] %vm441, 0.0
        %530 = vst.msk [vmem:[#allocation2 + $0x238] sm:$0xff] %vm441, 0.0
        %531 = vst.msk [vmem:[#allocation2 + $0x250] sm:$0xff] %vm441, 0.0
        %532 = vst.msk [vmem:[#allocation2 + $0x268] sm:$0xff] %vm441, 0.0
        %533 = vst.msk [vmem:[#allocation2 + $0x280] sm:$0xff] %vm441, 0.0
        %534 = vst.msk [vmem:[#allocation2 + $0x298] sm:$0xff] %vm441, 0.0
        %535 = vst.msk [vmem:[#allocation2 + $0x2b0] sm:$0xff] %vm441, 0.0
        %536 = vst.msk [vmem:[#allocation2 + $0x2c8] sm:$0xff] %vm441, 0.0
        %537 = vst.msk [vmem:[#allocation2 + $0x2e0] sm:$0xff] %vm441, 0.0
        %538 = vst.msk [vmem:[#allocation2 + $0x2f8] sm:$0xff] %vm441, 0.0
        %539 = vst.msk [vmem:[#allocation2 + $0x310] sm:$0xff] %vm441, 0.0
        %540 = vst.msk [vmem:[#allocation2 + $0x328] sm:$0xff] %vm441, 0.0
        %541 = vst.msk [vmem:[#allocation2 + $0x340] sm:$0xff] %vm441, 0.0
        %542 = vst.msk [vmem:[#allocation2 + $0x358] sm:$0xff] %vm441, 0.0
        %543 = vst.msk [vmem:[#allocation2 + $0x370] sm:$0xff] %vm441, 0.0
        %544 = vst.msk [vmem:[#allocation2 + $0x388] sm:$0xff] %vm441, 0.0
        %545 = vst.msk [vmem:[#allocation2 + $0x3a0] sm:$0xff] %vm441, 0.0
        %546 = vst.msk [vmem:[#allocation2 + $0x3b8] sm:$0xff] %vm441, 0.0
        %s547 = scalar_lea.vmem [#allocation2], 24
        %548 = vst.msk [vmem:[%s547 + $0x8] sm:$0xff] %vm441, %v409
        %549 = vst.msk [vmem:[%s547 + $0x20] sm:$0xff] %vm441, %v410
        %550 = vst.msk [vmem:[%s547 + $0x38] sm:$0xff] %vm441, %v411
        %551 = vst.msk [vmem:[%s547 + $0x50] sm:$0xff] %vm441, %v412
        %552 = vst.msk [vmem:[%s547 + $0x68] sm:$0xff] %vm441, %v413
        %553 = vst.msk [vmem:[%s547 + $0x80] sm:$0xff] %vm441, %v414
        %554 = vst.msk [vmem:[%s547 + $0x98] sm:$0xff] %vm441, %v415
        %555 = vst.msk [vmem:[%s547 + $0xb0] sm:$0xff] %vm441, %v416
        %s556 = scalar_lea.vmem [#allocation2], 264
        %557 = vst.msk [vmem:[%s556 + $0x8] sm:$0xff] %vm441, %v417
        %558 = vst.msk [vmem:[%s556 + $0x20] sm:$0xff] %vm441, %v418
        %559 = vst.msk [vmem:[%s556 + $0x38] sm:$0xff] %vm441, %v419
        %560 = vst.msk [vmem:[%s556 + $0x50] sm:$0xff] %vm441, %v420
        %561 = vst.msk [vmem:[%s556 + $0x68] sm:$0xff] %vm441, %v421
        %562 = vst.msk [vmem:[%s556 + $0x80] sm:$0xff] %vm441, %v422
        %563 = vst.msk [vmem:[%s556 + $0x98] sm:$0xff] %vm441, %v423
        %564 = vst.msk [vmem:[%s556 + $0xb0] sm:$0xff] %vm441, %v424
        %s565 = scalar_lea.vmem [#allocation2], 504
        %566 = vst.msk [vmem:[%s565 + $0x8] sm:$0xff] %vm441, %v425
        %567 = vst.msk [vmem:[%s565 + $0x20] sm:$0xff] %vm441, %v426
        %568 = vst.msk [vmem:[%s565 + $0x38] sm:$0xff] %vm441, %v427
        %569 = vst.msk [vmem:[%s565 + $0x50] sm:$0xff] %vm441, %v428
        %570 = vst.msk [vmem:[%s565 + $0x68] sm:$0xff] %vm441, %v429
        %571 = vst.msk [vmem:[%s565 + $0x80] sm:$0xff] %vm441, %v430
        %572 = vst.msk [vmem:[%s565 + $0x98] sm:$0xff] %vm441, %v431
        %573 = vst.msk [vmem:[%s565 + $0xb0] sm:$0xff] %vm441, %v432
        %s574 = scalar_lea.vmem [#allocation2], 744
        %575 = vst.msk [vmem:[%s574 + $0x8] sm:$0xff] %vm441, %v433
        %576 = vst.msk [vmem:[%s574 + $0x20] sm:$0xff] %vm441, %v434
        %577 = vst.msk [vmem:[%s574 + $0x38] sm:$0xff] %vm441, %v435
        %578 = vst.msk [vmem:[%s574 + $0x50] sm:$0xff] %vm441, %v436
        %579 = vst.msk [vmem:[%s574 + $0x68] sm:$0xff] %vm441, %v437
        %580 = vst.msk [vmem:[%s574 + $0x80] sm:$0xff] %vm441, %v438
        %581 = vst.msk [vmem:[%s574 + $0x98] sm:$0xff] %vm441, %v439
        %582 = vst.msk [vmem:[%s574 + $0xb0] sm:$0xff] %vm441, %v440
        %s583 = scalar_lea.vmem [#allocation2], 720
        %v584 = vld [vmem:[%s583 + $0x7] sm:$0xff]
        %v585 = vld [vmem:[%s583 + $0x1f] sm:$0xff]
        %v586 = vld [vmem:[%s583 + $0x37] sm:$0xff]
        %v587 = vld [vmem:[%s583 + $0x4f] sm:$0xff]
        %v588 = vld [vmem:[%s583 + $0x67] sm:$0xff]
        %v589 = vld [vmem:[%s583 + $0x7f] sm:$0xff]
        %v590 = vld [vmem:[%s583 + $0x97] sm:$0xff]
        %v591 = vld [vmem:[%s583 + $0xaf] sm:$0xff]
        %s592 = scalar_lea.vmem [#allocation2], 480
        %v593 = vld [vmem:[%s592 + $0x8] sm:$0xff]
        %v594 = vld [vmem:[%s592 + $0x20] sm:$0xff]
        %v595 = vld [vmem:[%s592 + $0x38] sm:$0xff]
        %v596 = vld [vmem:[%s592 + $0x50] sm:$0xff]
        %v597 = vld [vmem:[%s592 + $0x68] sm:$0xff]
        %v598 = vld [vmem:[%s592 + $0x80] sm:$0xff]
        %v599 = vld [vmem:[%s592 + $0x98] sm:$0xff]
        %v600 = vld [vmem:[%s592 + $0xb0] sm:$0xff]
        %v601 = vld [vmem:[%s583 + $0x8] sm:$0xff]
        %v602 = vld [vmem:[%s583 + $0x20] sm:$0xff]
        %v603 = vld [vmem:[%s583 + $0x38] sm:$0xff]
        %v604 = vld [vmem:[%s583 + $0x50] sm:$0xff]
        %v605 = vld [vmem:[%s583 + $0x68] sm:$0xff]
        %v606 = vld [vmem:[%s583 + $0x80] sm:$0xff]
        %v607 = vld [vmem:[%s583 + $0x98] sm:$0xff]
        %v608 = vld [vmem:[%s583 + $0xb0] sm:$0xff]
        %v609 = vld [vmem:[%s556 + $0x7] sm:$0xff]
        %v610 = vld [vmem:[%s556 + $0x1f] sm:$0xff]
        %v611 = vld [vmem:[%s556 + $0x37] sm:$0xff]
        %v612 = vld [vmem:[%s556 + $0x4f] sm:$0xff]
        %v613 = vld [vmem:[%s556 + $0x67] sm:$0xff]
        %v614 = vld [vmem:[%s556 + $0x7f] sm:$0xff]
        %v615 = vld [vmem:[%s556 + $0x97] sm:$0xff]
        %v616 = vld [vmem:[%s556 + $0xaf] sm:$0xff]
        %v617 = vld [vmem:[%s547 + $0x8] sm:$0xff]
        %v618 = vld [vmem:[%s547 + $0x20] sm:$0xff]
        %v619 = vld [vmem:[%s547 + $0x38] sm:$0xff]
        %v620 = vld [vmem:[%s547 + $0x50] sm:$0xff]
        %v621 = vld [vmem:[%s547 + $0x68] sm:$0xff]
        %v622 = vld [vmem:[%s547 + $0x80] sm:$0xff]
        %v623 = vld [vmem:[%s547 + $0x98] sm:$0xff]
        %v624 = vld [vmem:[%s547 + $0xb0] sm:$0xff]
        %v625 = vld [vmem:[%s556 + $0x8] sm:$0xff]
        %v626 = vld [vmem:[%s556 + $0x20] sm:$0xff]
        %v627 = vld [vmem:[%s556 + $0x38] sm:$0xff]
        %v628 = vld [vmem:[%s556 + $0x50] sm:$0xff]
        %v629 = vld [vmem:[%s556 + $0x68] sm:$0xff]
        %v630 = vld [vmem:[%s556 + $0x80] sm:$0xff]
        %v631 = vld [vmem:[%s556 + $0x98] sm:$0xff]
        %v632 = vld [vmem:[%s556 + $0xb0] sm:$0xff]
        %v633 = vld [vmem:[%s574 + $0x7] sm:$0xff]
        %v634 = vld [vmem:[%s574 + $0x1f] sm:$0xff]
        %v635 = vld [vmem:[%s574 + $0x37] sm:$0xff]
        %v636 = vld [vmem:[%s574 + $0x4f] sm:$0xff]
        %v637 = vld [vmem:[%s574 + $0x67] sm:$0xff]
        %v638 = vld [vmem:[%s574 + $0x7f] sm:$0xff]
        %v639 = vld [vmem:[%s574 + $0x97] sm:$0xff]
        %v640 = vld [vmem:[%s574 + $0xaf] sm:$0xff]
        %v641 = vld [vmem:[%s565 + $0x8] sm:$0xff]
        %v642 = vld [vmem:[%s565 + $0x20] sm:$0xff]
        %v643 = vld [vmem:[%s565 + $0x38] sm:$0xff]
        %v644 = vld [vmem:[%s565 + $0x50] sm:$0xff]
        %v645 = vld [vmem:[%s565 + $0x68] sm:$0xff]
        %v646 = vld [vmem:[%s565 + $0x80] sm:$0xff]
        %v647 = vld [vmem:[%s565 + $0x98] sm:$0xff]
        %v648 = vld [vmem:[%s565 + $0xb0] sm:$0xff]
        %v649 = vld [vmem:[%s574 + $0x8] sm:$0xff]
        %v650 = vld [vmem:[%s574 + $0x20] sm:$0xff]
        %v651 = vld [vmem:[%s574 + $0x38] sm:$0xff]
        %v652 = vld [vmem:[%s574 + $0x50] sm:$0xff]
        %v653 = vld [vmem:[%s574 + $0x68] sm:$0xff]
        %v654 = vld [vmem:[%s574 + $0x80] sm:$0xff]
        %v655 = vld [vmem:[%s574 + $0x98] sm:$0xff]
        %v656 = vld [vmem:[%s574 + $0xb0] sm:$0xff]
        %665 = vrot.lane.b32.xlu0 %v593, 4
        %v666 = vpop.permute.xlu0 %665
        %667 = vrot.lane.b32.xlu0 %v594, 4
        %v668 = vpop.permute.xlu0 %667
        %669 = vrot.lane.b32.xlu0 %v595, 4
        %v670 = vpop.permute.xlu0 %669
        %671 = vrot.lane.b32.xlu0 %v596, 4
        %v672 = vpop.permute.xlu0 %671
        %673 = vrot.lane.b32.xlu0 %v597, 4
        %v674 = vpop.permute.xlu0 %673
        %675 = vrot.lane.b32.xlu0 %v598, 4
        %v676 = vpop.permute.xlu0 %675
        %677 = vrot.lane.b32.xlu0 %v599, 4
        %v678 = vpop.permute.xlu0 %677
        %679 = vrot.lane.b32.xlu0 %v600, 4
        %v680 = vpop.permute.xlu0 %679
        %697 = vrot.lane.b32.xlu0 %v601, 8
        %v698 = vpop.permute.xlu0 %697
        %699 = vrot.lane.b32.xlu0 %v602, 8
        %v700 = vpop.permute.xlu0 %699
        %701 = vrot.lane.b32.xlu0 %v603, 8
        %v702 = vpop.permute.xlu0 %701
        %703 = vrot.lane.b32.xlu0 %v604, 8
        %v704 = vpop.permute.xlu0 %703
        %705 = vrot.lane.b32.xlu0 %v605, 8
        %v706 = vpop.permute.xlu0 %705
        %707 = vrot.lane.b32.xlu0 %v606, 8
        %v708 = vpop.permute.xlu0 %707
        %709 = vrot.lane.b32.xlu0 %v607, 8
        %v710 = vpop.permute.xlu0 %709
        %711 = vrot.lane.b32.xlu0 %v608, 8
        %v712 = vpop.permute.xlu0 %711
        %729 = vrot.lane.b32.xlu0 %v609, 12
        %v730 = vpop.permute.xlu0 %729
        %731 = vrot.lane.b32.xlu0 %v610, 12
        %v732 = vpop.permute.xlu0 %731
        %733 = vrot.lane.b32.xlu0 %v611, 12
        %v734 = vpop.permute.xlu0 %733
        %735 = vrot.lane.b32.xlu0 %v612, 12
        %v736 = vpop.permute.xlu0 %735
        %737 = vrot.lane.b32.xlu0 %v613, 12
        %v738 = vpop.permute.xlu0 %737
        %739 = vrot.lane.b32.xlu0 %v614, 12
        %v740 = vpop.permute.xlu0 %739
        %741 = vrot.lane.b32.xlu0 %v615, 12
        %v742 = vpop.permute.xlu0 %741
        %743 = vrot.lane.b32.xlu0 %v616, 12
        %v744 = vpop.permute.xlu0 %743
        %761 = vrot.lane.b32.xlu0 %v617, 16
        %v762 = vpop.permute.xlu0 %761
        %763 = vrot.lane.b32.xlu0 %v618, 16
        %v764 = vpop.permute.xlu0 %763
        %765 = vrot.lane.b32.xlu0 %v619, 16
        %v766 = vpop.permute.xlu0 %765
        %767 = vrot.lane.b32.xlu0 %v620, 16
        %v768 = vpop.permute.xlu0 %767
        %769 = vrot.lane.b32.xlu0 %v621, 16
        %v770 = vpop.permute.xlu0 %769
        %771 = vrot.lane.b32.xlu0 %v622, 16
        %v772 = vpop.permute.xlu0 %771
        %773 = vrot.lane.b32.xlu0 %v623, 16
        %v774 = vpop.permute.xlu0 %773
        %775 = vrot.lane.b32.xlu0 %v624, 16
        %v776 = vpop.permute.xlu0 %775
        %793 = vrot.lane.b32.xlu0 %v625, 20
        %v794 = vpop.permute.xlu0 %793
        %795 = vrot.lane.b32.xlu0 %v626, 20
        %v796 = vpop.permute.xlu0 %795
        %797 = vrot.lane.b32.xlu0 %v627, 20
        %v798 = vpop.permute.xlu0 %797
        %799 = vrot.lane.b32.xlu0 %v628, 20
        %v800 = vpop.permute.xlu0 %799
        %801 = vrot.lane.b32.xlu0 %v629, 20
        %v802 = vpop.permute.xlu0 %801
        %803 = vrot.lane.b32.xlu0 %v630, 20
        %v804 = vpop.permute.xlu0 %803
        %805 = vrot.lane.b32.xlu0 %v631, 20
        %v806 = vpop.permute.xlu0 %805
        %807 = vrot.lane.b32.xlu0 %v632, 20
        %v808 = vpop.permute.xlu0 %807
        %825 = vrot.lane.b32.xlu0 %v633, 24
        %v826 = vpop.permute.xlu0 %825
        %827 = vrot.lane.b32.xlu0 %v634, 24
        %v828 = vpop.permute.xlu0 %827
        %829 = vrot.lane.b32.xlu0 %v635, 24
        %v830 = vpop.permute.xlu0 %829
        %831 = vrot.lane.b32.xlu0 %v636, 24
        %v832 = vpop.permute.xlu0 %831
        %833 = vrot.lane.b32.xlu0 %v637, 24
        %v834 = vpop.permute.xlu0 %833
        %835 = vrot.lane.b32.xlu0 %v638, 24
        %v836 = vpop.permute.xlu0 %835
        %837 = vrot.lane.b32.xlu0 %v639, 24
        %v838 = vpop.permute.xlu0 %837
        %839 = vrot.lane.b32.xlu0 %v640, 24
        %v840 = vpop.permute.xlu0 %839
        %857 = vrot.lane.b32.xlu0 %v641, 28
        %v858 = vpop.permute.xlu0 %857
        %859 = vrot.lane.b32.xlu0 %v642, 28
        %v860 = vpop.permute.xlu0 %859
        %861 = vrot.lane.b32.xlu0 %v643, 28
        %v862 = vpop.permute.xlu0 %861
        %863 = vrot.lane.b32.xlu0 %v644, 28
        %v864 = vpop.permute.xlu0 %863
        %865 = vrot.lane.b32.xlu0 %v645, 28
        %v866 = vpop.permute.xlu0 %865
        %867 = vrot.lane.b32.xlu0 %v646, 28
        %v868 = vpop.permute.xlu0 %867
        %869 = vrot.lane.b32.xlu0 %v647, 28
        %v870 = vpop.permute.xlu0 %869
        %871 = vrot.lane.b32.xlu0 %v648, 28
        %v872 = vpop.permute.xlu0 %871
        %889 = vrot.lane.b32.xlu0 %v649, 32
        %v890 = vpop.permute.xlu0 %889
        %891 = vrot.lane.b32.xlu0 %v650, 32
        %v892 = vpop.permute.xlu0 %891
        %893 = vrot.lane.b32.xlu0 %v651, 32
        %v894 = vpop.permute.xlu0 %893
        %895 = vrot.lane.b32.xlu0 %v652, 32
        %v896 = vpop.permute.xlu0 %895
        %897 = vrot.lane.b32.xlu0 %v653, 32
        %v898 = vpop.permute.xlu0 %897
        %899 = vrot.lane.b32.xlu0 %v654, 32
        %v900 = vpop.permute.xlu0 %899
        %901 = vrot.lane.b32.xlu0 %v655, 32
        %v902 = vpop.permute.xlu0 %901
        %903 = vrot.lane.b32.xlu0 %v656, 32
        %v904 = vpop.permute.xlu0 %903
        %v913 = vsel %vm441, %v584, %v666
        %v914 = vsel %vm441, %v585, %v668
        %v915 = vsel %vm441, %v586, %v670
        %v916 = vsel %vm441, %v587, %v672
        %v917 = vsel %vm441, %v588, %v674
        %v918 = vsel %vm441, %v589, %v676
        %v919 = vsel %vm441, %v590, %v678
        %v920 = vsel %vm441, %v591, %v680
        %vm921 = vcmask 64512
        %v922 = vsel %vm921, %v913, %v698
        %v923 = vsel %vm921, %v914, %v700
        %v924 = vsel %vm921, %v915, %v702
        %v925 = vsel %vm921, %v916, %v704
        %v926 = vsel %vm921, %v917, %v706
        %v927 = vsel %vm921, %v918, %v708
        %v928 = vsel %vm921, %v919, %v710
        %v929 = vsel %vm921, %v920, %v712
        %vm930 = vcmask 97280
        %v931 = vsel %vm930, %v922, %v730
        %v932 = vsel %vm930, %v923, %v732
        %v933 = vsel %vm930, %v924, %v734
        %v934 = vsel %vm930, %v925, %v736
        %v935 = vsel %vm930, %v926, %v738
        %v936 = vsel %vm930, %v927, %v740
        %v937 = vsel %vm930, %v928, %v742
        %v938 = vsel %vm930, %v929, %v744
        %vm939 = vcmask 130048
        %v940 = vsel %vm939, %v931, %v762
        %v941 = vsel %vm939, %v932, %v764
        %v942 = vsel %vm939, %v933, %v766
        %v943 = vsel %vm939, %v934, %v768
        %v944 = vsel %vm939, %v935, %v770
        %v945 = vsel %vm939, %v936, %v772
        %v946 = vsel %vm939, %v937, %v774
        %v947 = vsel %vm939, %v938, %v776
        %vm948 = vcmask 162816
        %v949 = vsel %vm948, %v940, %v794
        %v950 = vsel %vm948, %v941, %v796
        %v951 = vsel %vm948, %v942, %v798
        %v952 = vsel %vm948, %v943, %v800
        %v953 = vsel %vm948, %v944, %v802
        %v954 = vsel %vm948, %v945, %v804
        %v955 = vsel %vm948, %v946, %v806
        %v956 = vsel %vm948, %v947, %v808
        %vm957 = vcmask 195584
        %v958 = vsel %vm957, %v949, %v826
        %v959 = vsel %vm957, %v950, %v828
        %v960 = vsel %vm957, %v951, %v830
        %v961 = vsel %vm957, %v952, %v832
        %v962 = vsel %vm957, %v953, %v834
        %v963 = vsel %vm957, %v954, %v836
        %v964 = vsel %vm957, %v955, %v838
        %v965 = vsel %vm957, %v956, %v840
        %vm966 = vcmask 228352
        %v967 = vsel %vm966, %v958, %v858
        %v968 = vsel %vm966, %v959, %v860
        %v969 = vsel %vm966, %v960, %v862
        %v970 = vsel %vm966, %v961, %v864
        %v971 = vsel %vm966, %v962, %v866
        %v972 = vsel %vm966, %v963, %v868
        %v973 = vsel %vm966, %v964, %v870
        %v974 = vsel %vm966, %v965, %v872
        %vm975 = vcmask 261120
        %v976 = vsel %vm975, %v967, %v890
        %v977 = vsel %vm975, %v968, %v892
        %v978 = vsel %vm975, %v969, %v894
        %v979 = vsel %vm975, %v970, %v896
        %v980 = vsel %vm975, %v971, %v898
        %v981 = vsel %vm975, %v972, %v900
        %v982 = vsel %vm975, %v973, %v902
        %v983 = vsel %vm975, %v974, %v904
        %v984 = vld [vmem:[%s4] sm:$0xff]
        %v985 = vld [vmem:[%s4 + $0x8] sm:$0xff]
        %v986 = vld [vmem:[%s4 + $0x10] sm:$0xff]
        %v987 = vld [vmem:[%s4 + $0x18] sm:$0xff]
        %v988 = vld [vmem:[%s4 + $0x20] sm:$0xf]
        %vm989 = vcmask 293888
        %v991 = vsel %vm989, %v976, 0
        %v994 = vsel %vm989, %v977, 0
        %v997 = vsel %vm989, %v978, 0
        %v1000 = vsel %vm989, %v979, 0
        %v1003 = vsel %vm989, %v980, 0
        %v1006 = vsel %vm989, %v981, 0
        %v1009 = vsel %vm989, %v982, 0
        %v1012 = vsel %vm989, %v983, 0
        %vm1014 = vcmask 1043456
        %v1016 = vsel %vm1014, %v988, 0
        %1018 = vmatprep.subr.mxu0 0.0
        %1019 = vmatpush1.msra.mxu0 0.0
        %1020 = vmatprep.subr.mxu0 0.0
        %1021 = vmatpush1.msra.mxu0 0.0
        %1022 = vmatprep.subr.mxu0 0.0
        %1023 = vmatpush1.msra.mxu0 0.0
        %1024 = vmatprep.subr.mxu0 0.0
        %1025 = vmatpush1.msra.mxu0 0.0
        %1026 = vmatprep.subr.mxu0 0.0
        %1027 = vmatpush1.msra.mxu0 0.0
        %1028 = vmatprep.subr.mxu0 0.0
        %1029 = vmatpush1.msra.mxu0 0.0
        %1030 = vmatprep.subr.mxu0 0.0
        %1031 = vmatpush1.msra.mxu0 0.0
        %1032 = vmatprep.subr.mxu0 0.0
        %1033 = vmatpush1.msra.mxu0 0.0
        %1034 = vmatprep.subr.mxu0 0.0
        %1035 = vmatpush1.msra.mxu0 0.0
        %1036 = vmatprep.subr.mxu0 0.0
        %1037 = vmatpush1.msra.mxu0 0.0
        %1038 = vmatprep.subr.mxu0 0.0
        %1039 = vmatpush1.msra.mxu0 0.0
        %1040 = vmatprep.subr.mxu0 0.0
        %1041 = vmatpush1.msra.mxu0 %v1016
        %1042 = vmatprep.subr.mxu0 0.0
        %1043 = vmatpush1.msra.mxu0 %v987
        %1044 = vmatprep.subr.mxu0 0.0
        %1045 = vmatpush1.msra.mxu0 %v986
        %1046 = vmatprep.subr.mxu0 0.0
        %1047 = vmatpush1.msra.mxu0 %v985
        %1048 = vmatprep.subr.mxu0 0.0
        %1049 = vmatpush1.msra.mxu0 %v984
        %1050 = vmatprep.subr.mxu0 0.0
        %1051 = vmatpush2.msra.mxu0 0.0
        %1052 = vmatprep.subr.mxu0 0.0
        %1053 = vmatpush2.msra.mxu0 0.0
        %1054 = vmatprep.subr.mxu0 0.0
        %1055 = vmatpush2.msra.mxu0 0.0
        %1056 = vmatprep.subr.mxu0 0.0
        %1057 = vmatpush2.msra.mxu0 0.0
        %1058 = vmatprep.subr.mxu0 0.0
        %1059 = vmatpush2.msra.mxu0 0.0
        %1060 = vmatprep.subr.mxu0 0.0
        %1061 = vmatpush2.msra.mxu0 0.0
        %1062 = vmatprep.subr.mxu0 0.0
        %1063 = vmatpush2.msra.mxu0 0.0
        %1064 = vmatprep.subr.mxu0 0.0
        %1065 = vmatpush2.msra.mxu0 0.0
        %1066 = vmatprep.subr.mxu0 0.0
        %1067 = vmatpush2.msra.mxu0 0.0
        %1068 = vmatprep.subr.mxu0 0.0
        %1069 = vmatpush2.msra.mxu0 0.0
        %1070 = vmatprep.subr.mxu0 0.0
        %1071 = vmatpush2.msra.mxu0 0.0
        %1072 = vmatprep.subr.mxu0 0.0
        %1073 = vmatpush2.msra.mxu0 0.0
        %1074 = vmatprep.subr.mxu0 0.0
        %1075 = vmatpush2.msra.mxu0 0.0
        %1076 = vmatprep.subr.mxu0 0.0
        %1077 = vmatpush2.msra.mxu0 0.0
        %1078 = vmatprep.subr.mxu0 0.0
        %1079 = vmatpush2.msra.mxu0 0.0
        %1080 = vmatprep.subr.mxu0 0.0
        %1081 = vmatpush2.msra.mxu0 0.0
        %1082 = vmatprep.mubr.f32.mxu0 0.0
        %1083 = vmatmul.mubr.f32.gmra.mxu0 %v991
        %v1084 = vpop.f32.mrf.mxu0
        %v1085 = vadd.f32 0.0, %v1084
        %v1086 = vpop.f32.mrf.mxu0
        %1087 = vmatprep.mubr.f32.mxu0 0.0
        %1088 = vmatmul.mubr.f32.gmra.mxu0 %v994
        %v1089 = vpop.f32.mrf.mxu0
        %v1090 = vadd.f32 0.0, %v1089
        %v1091 = vpop.f32.mrf.mxu0
        %1092 = vmatprep.mubr.f32.mxu0 0.0
        %1093 = vmatmul.mubr.f32.gmra.mxu0 %v997
        %v1094 = vpop.f32.mrf.mxu0
        %v1095 = vadd.f32 0.0, %v1094
        %v1096 = vpop.f32.mrf.mxu0
        %1097 = vmatprep.mubr.f32.mxu0 0.0
        %1098 = vmatmul.mubr.f32.gmra.mxu0 %v1000
        %v1099 = vpop.f32.mrf.mxu0
        %v1100 = vadd.f32 0.0, %v1099
        %v1101 = vpop.f32.mrf.mxu0
        %1102 = vmatprep.mubr.f32.mxu0 0.0
        %1103 = vmatmul.mubr.f32.gmra.mxu0 %v1003
        %v1104 = vpop.f32.mrf.mxu0
        %v1105 = vadd.f32 0.0, %v1104
        %v1106 = vpop.f32.mrf.mxu0
        %1107 = vmatprep.mubr.f32.mxu0 0.0
        %1108 = vmatmul.mubr.f32.gmra.mxu0 %v1006
        %v1109 = vpop.f32.mrf.mxu0
        %v1110 = vadd.f32 0.0, %v1109
        %v1111 = vpop.f32.mrf.mxu0
        %1112 = vmatprep.mubr.f32.mxu0 0.0
        %1113 = vmatmul.mubr.f32.gmra.mxu0 %v1009
        %v1114 = vpop.f32.mrf.mxu0
        %v1115 = vadd.f32 0.0, %v1114
        %v1116 = vpop.f32.mrf.mxu0
        %1117 = vmatprep.mubr.f32.mxu0 0.0
        %1118 = vmatmul.mubr.f32.gmra.mxu0 %v1012
        %v1119 = vpop.f32.mrf.mxu0
        %v1120 = vadd.f32 0.0, %v1119
        %v1121 = vpop.f32.mrf.mxu0
        %1122 = vdwg.mxu0
        %1123 = vst.msk [vmem:[%s298] sm:$0xff] %vm921, %v1085
        %1124 = vst.msk [vmem:[%s298 + $0x8] sm:$0xff] %vm921, %v1090
        %1125 = vst.msk [vmem:[%s298 + $0x10] sm:$0xff] %vm921, %v1095
        %1126 = vst.msk [vmem:[%s298 + $0x18] sm:$0xff] %vm921, %v1100
        %1127 = vst.msk [vmem:[%s298 + $0x20] sm:$0xff] %vm921, %v1105
        %1128 = vst.msk [vmem:[%s298 + $0x28] sm:$0xff] %vm921, %v1110
        %1129 = vst.msk [vmem:[%s298 + $0x30] sm:$0xff] %vm921, %v1115
        %1130 = vst.msk [vmem:[%s298 + $0x38] sm:$0xff] %vm921, %v1120
        %v1131 = vsel %vm921, %v1085, 0.0
        %v1132 = vsel %vm921, %v1090, 0.0
        %v1133 = vadd.f32 %v1131, %v1132
        %v1134 = vsel %vm921, %v1095, 0.0
        %v1135 = vadd.f32 %v1133, %v1134
        %v1136 = vsel %vm921, %v1100, 0.0
        %v1137 = vadd.f32 %v1135, %v1136
        %v1138 = vsel %vm921, %v1105, 0.0
        %v1139 = vadd.f32 %v1137, %v1138
        %v1140 = vsel %vm921, %v1110, 0.0
        %v1141 = vadd.f32 %v1139, %v1140
        %v1142 = vsel %vm921, %v1115, 0.0
        %v1143 = vadd.f32 %v1141, %v1142
        %v1144 = vsel %vm921, %v1120, 0.0
        %v1145 = vadd.f32 %v1143, %v1144
        %v1146 = vrot.slane %v1145, 4
        %v1147 = vadd.f32 %v1145, %v1146
        %v1148 = vrot.slane %v1147, 2
        %v1149 = vadd.f32 %v1147, %v1148
        %v1150 = vrot.slane %v1149, 1
        %v1151 = vadd.f32 %v1149, %v1150
        %vm1152 = vcmask 57344
        %1153 = vst.msk [vmem:[%s282] sm:$0x1] %vm1152, %v1151
        %v1154 = vmul.f32 %v1085, %v1085
        %v1155 = vmul.f32 %v1090, %v1090
        %v1156 = vmul.f32 %v1095, %v1095
        %v1157 = vmul.f32 %v1100, %v1100
        %v1158 = vmul.f32 %v1105, %v1105
        %v1159 = vmul.f32 %v1110, %v1110
        %v1160 = vmul.f32 %v1115, %v1115
        %v1161 = vmul.f32 %v1120, %v1120
        %v1162 = vsel %vm921, %v1154, 0.0
        %v1163 = vsel %vm921, %v1155, 0.0
        %v1164 = vadd.f32 %v1162, %v1163
        %v1165 = vsel %vm921, %v1156, 0.0
        %v1166 = vadd.f32 %v1164, %v1165
        %v1167 = vsel %vm921, %v1157, 0.0
        %v1168 = vadd.f32 %v1166, %v1167
        %v1169 = vsel %vm921, %v1158, 0.0
        %v1170 = vadd.f32 %v1168, %v1169
        %v1171 = vsel %vm921, %v1159, 0.0
        %v1172 = vadd.f32 %v1170, %v1171
        %v1173 = vsel %vm921, %v1160, 0.0
        %v1174 = vadd.f32 %v1172, %v1173
        %v1175 = vsel %vm921, %v1161, 0.0
        %v1176 = vadd.f32 %v1174, %v1175
        %v1177 = vrot.slane %v1176, 4
        %v1178 = vadd.f32 %v1176, %v1177
        %v1179 = vrot.slane %v1178, 2
        %v1180 = vadd.f32 %v1178, %v1179
        %v1181 = vrot.slane %v1180, 1
        %v1182 = vadd.f32 %v1180, %v1181
        %1183 = vst.msk [vmem:[%s288] sm:$0x1] %vm1152, %v1182
        %p1184 = scmp.lt.s32.totalorder %s26, 1
        %s1185 = scalar_select %p1184, %s26, 1
        %s1186 = smul.addr %s1185, 8
        %s1187 = smul.addr %s1186, 8
        %s1188 = scalar_lea.vmem %s5, %s1187
        %s1189 = sand.u32 %s170, 1
        %s1190 = scalar_lea.sflag [#allocation5], %s1189
        %s1191 = sand.u32 %s170, 1
        %s1192 = scalar_lea.vmem [#allocation4], %s1191
        %s1193 = sand.u32 %s196, 1
        %s1194 = scalar_lea.sflag [#allocation7], %s1193
        %s1195 = sand.u32 %s196, 1
        %s1196 = scalar_lea.vmem [#allocation6], %s1195
        // Predicated region
        $region41: #{tpu_custom_call.1} parent=39 // pred_check
          %p1197 = pneg %p154
        $region42: #{tpu_custom_call.1} parent=39 // pred_check_branch
          %1199 = sbr.rel (%p1197) target = $region44
        $region43: #{tpu_custom_call.1} parent=39 // pred_region
          _
        $region44: #{tpu_custom_call.1} parent=39 // pred_fallthru
          _
        // Predicated region
        $region45: #{tpu_custom_call.1} parent=39 // pred_check
          %p1200 = pneg %p180
        $region46: #{tpu_custom_call.1} parent=39 // pred_check_branch
          %1202 = sbr.rel (%p1200) target = $region48
        $region47: #{tpu_custom_call.1} parent=39 // pred_region
          %s1204 = ssub.s32 16, 16
          %1205 = vsyncadd %s1190, %s1204
          %s1206 = smul.addr %s26, 16
          %s1207 = scalar_lea.hbm %s6, %s1206
          %s1209 = sshll.u32 %s1192, 4
          %s1210 = int_to_ptr.vmem [resolvable:$true] %s1209
          %1212 = dma.vmem_to_hbm [thread:$0]  %s1210, 16, %s1207, %s1190
        $region48: #{tpu_custom_call.1} parent=39 // pred_fallthru
          _
        // Predicated region
        $region49: #{tpu_custom_call.1} parent=39 // pred_check
          %p1213 = pneg %p206
        $region50: #{tpu_custom_call.1} parent=39 // pred_check_branch
          %1215 = sbr.rel (%p1213) target = $region52
        $region51: #{tpu_custom_call.1} parent=39 // pred_region
          %s1217 = ssub.s32 16, 16
          %1218 = vsyncadd %s1194, %s1217
          %s1219 = smul.addr %s26, 16
          %s1220 = scalar_lea.hbm %s7, %s1219
          %s1222 = sshll.u32 %s1196, 4
          %s1223 = int_to_ptr.vmem [resolvable:$true] %s1222
          %1225 = dma.vmem_to_hbm [thread:$0]  %s1223, 16, %s1220, %s1194
        $region52: #{tpu_custom_call.1} parent=39 // pred_fallthru
          _
      $region40: #{tpu_custom_call.1} parent=5 // pred_fallthru
        _
      %p1226 = scmp.le.s32.totalorder 2, %s21
      // Predicated region
      $region53: #{tpu_custom_call.1} parent=5 // pred_check
        %p1227 = pneg %p1226
      $region54: #{tpu_custom_call.1} parent=5 // pred_check_branch
        %1229 = sbr.rel (%p1227) target = $region56
      $region55: #{tpu_custom_call.1} parent=5 // pred_region
        %s1230 = ssub.s32 %s21, 2
        // Predicated region
        $region57: #{tpu_custom_call.1} parent=55 // pred_check
          %p1231 = pneg %p160
        $region58: #{tpu_custom_call.1} parent=55 // pred_check_branch
          %1233 = sbr.rel (%p1231) target = $region60
        $region59: #{tpu_custom_call.1} parent=55 // pred_region
          %p1234 = scmp.lt.s32.totalorder %s27, 1
          %s1235 = scalar_select %p1234, %s27, 1
          %s1236 = smul.addr %s1235, 8
          %s1237 = smul.addr %s1236, 8
          %s1238 = scalar_lea.vmem %s5, %s1237
        $region60: #{tpu_custom_call.1} parent=55 // pred_fallthru
          _
        // Predicated region
        $region61: #{tpu_custom_call.1} parent=55 // pred_check
          %p1239 = pneg %p186
        $region62: #{tpu_custom_call.1} parent=55 // pred_check_branch
          %1241 = sbr.rel (%p1239) target = $region64
        $region63: #{tpu_custom_call.1} parent=55 // pred_region
          %s1242 = sand.u32 %s171, 1
          %s1243 = scalar_lea.sflag [#allocation5], %s1242
          %s1244 = sand.u32 %s171, 1
          %s1245 = scalar_lea.vmem [#allocation4], %s1244
          %1246 = dma.done %s1243, 16
        $region64: #{tpu_custom_call.1} parent=55 // pred_fallthru
          _
        // Predicated region
        $region65: #{tpu_custom_call.1} parent=55 // pred_check
          %p1247 = pneg %p212
        $region66: #{tpu_custom_call.1} parent=55 // pred_check_branch
          %1249 = sbr.rel (%p1247) target = $region68
        $region67: #{tpu_custom_call.1} parent=55 // pred_region
          %s1250 = sand.u32 %s197, 1
          %s1251 = scalar_lea.sflag [#allocation7], %s1250
          %s1252 = sand.u32 %s197, 1
          %s1253 = scalar_lea.vmem [#allocation6], %s1252
          %1254 = dma.done %s1251, 16
        $region68: #{tpu_custom_call.1} parent=55 // pred_fallthru
          _
      $region56: #{tpu_custom_call.1} parent=5 // pred_fallthru
        _
    $region6: #{tpu_custom_call.1} parent=1 // loop_footer
      %s25 = sadd.s32 1, %s21
    $region7: #{tpu_custom_call.1} parent=1 // loop_footer_branch
      %20 = sbr.rel target = $region3
    $region8: #{tpu_custom_call.1} parent=1 // loop_exit
      _
    %1255 = vsyncpa [#allocation5], 1
    %s1256 = scalar_lea.sflag [#allocation5], 1
    %1257 = vsyncpa %s1256, 1
    %1258 = vsyncpa [#allocation7], 1
    %s1259 = scalar_lea.sflag [#allocation7], 1
    %1260 = vsyncpa %s1259, 1

</llo_original>
